<compile_context>
chip_gen: v7x
topology: tpu7x:2x2x1
jax: 0.10.0
libtpu: 0.0.40
codegen_flags: <defaults>
</compile_context>

<pallas_src>
import jax
import jax.numpy as jnp
from jax import lax
from jax.experimental import pallas as pl
from jax.experimental.pallas import tpu as pltpu


def _lstm_head_kernel(x_ref, len_ref, wih_ref, whh_ref, b_ref,
                      h0_ref, c0_ref, wlin_ref, blin_ref, out_ref,
                      gx_scr, h_scr, c_scr):
    tc, bb, _ = x_ref.shape          # (time-chunk, batch-block, E)
    H = h0_ref.shape[1]
    nt = pl.num_programs(1)
    tq = pl.program_id(1)

    # Reverse-direction LSTM state starts from the provided initial state.
    # tq == 0 is the first processed chunk (the TAIL of the sequence, since the
    # x index_map walks chunks back-to-front).  Scratch persists across the
    # time axis and is re-initialised whenever a new batch block starts.
    # NOTE: this carry is only correct because time is the INNERMOST grid axis
    # and marked "arbitrary" — do not reorder the grid axes.
    @pl.when(tq == 0)
    def _():
        h_scr[...] = h0_ref[...].astype(jnp.float32)
        c_scr[...] = c0_ref[...].astype(jnp.float32)

    # ---- loop-invariant loads / broadcasts, hoisted out of the recurrence ----
    wih_v = wih_ref[...]
    whh_v = whh_ref[...]
    b_v = b_ref[...].astype(jnp.float32)
    lens_b = jnp.broadcast_to(len_ref[...], (bb, H))            # (bb, H) int32
    lane = lax.broadcasted_iota(jnp.int32, (bb, 4 * H), 1)
    is_g = jnp.logical_and(lane >= 2 * H, lane < 3 * H)         # g-gate lanes
    # sigmoid(x) = 0.5*tanh(0.5*x) + 0.5  -> one full-width tanh per step; the
    # i/f/o fix-up is cheap VPU work.  Scale/shift broadcasts hoisted here.
    pre_scale = jnp.where(is_g, 1.0, 0.5).astype(jnp.float32)   # also post-scale
    post_shift = jnp.where(is_g, 0.0, 0.5).astype(jnp.float32)
    base = (nt - 1 - tq) * tc        # absolute time of local step 0 in chunk

    # ---- hoisted input projection: ONE large-M GEMM off the serial path -----
    x_flat = x_ref[...].reshape(tc * bb, x_ref.shape[2])
    gx = jnp.dot(x_flat.astype(wih_v.dtype), wih_v,
                 preferred_element_type=jnp.float32) + b_v
    gx_scr[...] = gx.astype(gx_scr.dtype)

    # ---- serial reverse recurrence over this chunk ---------------------------
    def step(j, carry):
        h, c = carry
        t_local = tc - 1 - j                     # walk chunk back-to-front
        row0 = pl.multiple_of(t_local * bb, bb)
        gates = (gx_scr[pl.ds(row0, bb), :].astype(jnp.float32)
                 + jnp.dot(h.astype(whh_v.dtype), whh_v,
                           preferred_element_type=jnp.float32))
        # Single tanh, then affine fix-up: g lanes -> tanh, i/f/o -> sigmoid.
        act = jnp.tanh(gates * pre_scale) * pre_scale + post_shift
        i_g = act[:, 0 * H:1 * H]
        f_g = act[:, 1 * H:2 * H]
        g_g = act[:, 2 * H:3 * H]
        o_g = act[:, 3 * H:4 * H]
        c_new = f_g * c + i_g * g_g
        h_new = o_g * jnp.tanh(c_new)
        # Packed-sequence semantics: padded steps (t >= length) leave state
        # untouched; first real update of sequence b happens at t = len_b - 1.
        # (Out-of-range x padding in a ragged tail chunk is also discarded
        #  here since abs time >= T >= length.)
        mask = (base + t_local) < lens_b
        return jnp.where(mask, h_new, h), jnp.where(mask, c_new, c)

    h, c = lax.fori_loop(0, tc, step, (h_scr[...], c_scr[...]), unroll=True)
    h_scr[...] = h
    c_scr[...] = c

    # ---- after the last (t = 0) chunk: linear head + log-softmax ------------
    # TODO(synk): Dropout(p=0.2) is identity in eval mode; training-mode random
    # masking is not implemented here.
    @pl.when(tq == nt - 1)
    def _():
        wlin_v = wlin_ref[...]
        logits = (jnp.dot(h.astype(wlin_v.dtype), wlin_v,
                          preferred_element_type=jnp.float32)
                  + blin_ref[...].astype(jnp.float32))
        m = jnp.max(logits, axis=1, keepdims=True)               # LogSoftmax
        s = logits - m
        lse = jnp.log(jnp.sum(jnp.exp(s), axis=1, keepdims=True))
        out_ref[...] = (s - lse).astype(out_ref.dtype)


def lstm_classifier_forward(tokens, lengths, params, *,
                            time_chunk=8, batch_block=None):
    """tokens: (T, B) int32, lengths: (B,) int32 (descending, <= T)."""
    emb = params["embedding"][tokens].astype(params["wih_T"].dtype)  # (T,B,E)
    T, B, E = emb.shape
    H = params["h0_rev"].shape[1]
    n_out = params["blin"].shape[1]

    tc = min(time_chunk, T)
    nt = pl.cdiv(T, tc)
    # batch_block: multiple of 8 sublanes (16 for bf16); ideally 128+ rows for
    # real workloads, and <= B/2 on v7x so both TensorCores get a block.
    bb = B if batch_block is None else batch_block
    assert B % bb == 0 and bb % 8 == 0, "batch_block must divide B, %8==0"
    nb = B // bb

    # Explicit VMEM budget (double-buffered x, gx/h/c scratch, weights, state).
    w_isz = jnp.dtype(params["wih_T"].dtype).itemsize
    gx_dtype = params["wih_T"].dtype
    vmem_est = (2 * tc * bb * E * w_isz
                + tc * bb * 4 * H * jnp.dtype(gx_dtype).itemsize
                + 2 * bb * H * 4
                + 2 * (E * 4 * H + H * 4 * H + 4 * H + H * n_out + n_out) * w_isz
                + 2 * 2 * bb * H * 4
                + 2 * bb * n_out * 4
                + 2 * bb * 4)
    vmem_limit = int(min(max(2 * vmem_est + (2 << 20), 4 << 20), 64 << 20))

    return pl.pallas_call(
        _lstm_head_kernel,
        out_shape=jax.ShapeDtypeStruct((B, n_out), jnp.float32),
        grid=(nb, nt),                       # (batch blocks, time chunks)
        in_specs=[
            # time chunks are walked back-to-front (reverse direction)
            pl.BlockSpec((tc, bb, E), lambda b, t: (nt - 1 - t, b, 0)),
            pl.BlockSpec((bb, 1), lambda b, t: (b, 0)),
            pl.BlockSpec((E, 4 * H), lambda b, t: (0, 0)),
            pl.BlockSpec((H, 4 * H), lambda b, t: (0, 0)),
            pl.BlockSpec((1, 4 * H), lambda b, t: (0, 0)),
            pl.BlockSpec((bb, H), lambda b, t: (b, 0)),
            pl.BlockSpec((bb, H), lambda b, t: (b, 0)),
            pl.BlockSpec((H, n_out), lambda b, t: (0, 0)),
            pl.BlockSpec((1, n_out), lambda b, t: (0, 0)),
        ],
        out_specs=pl.BlockSpec((bb, n_out), lambda b, t: (b, 0)),
        scratch_shapes=[
            pltpu.VMEM((tc * bb, 4 * H), gx_dtype),     # hoisted gates_x
            pltpu.VMEM((bb, H), jnp.float32),           # h state (carried)
            pltpu.VMEM((bb, H), jnp.float32),           # c state (carried)
        ],
        compiler_params=pltpu.CompilerParams(
            dimension_semantics=("parallel", "arbitrary"),
            vmem_limit_bytes=vmem_limit),
    )(emb,
      lengths.reshape(B, 1).astype(jnp.int32),
      params["wih_T"], params["whh_T"], params["b"],
      params["h0_rev"], params["c0_rev"],
      params["wlin_T"], params["blin"])


def reference_forward(tokens, lengths, params):
    """Pure-JAX reference for correctness checking (matches PyTorch math)."""
    emb = params["embedding"][tokens].astype(jnp.float32)
    T, B, E = emb.shape
    H = params["h0_rev"].shape[1]
    h, c = params["h0_rev"], params["c0_rev"]
    for t in range(T - 1, -1, -1):
        gates = emb[t] @ params["wih_T"] + h @ params["whh_T"] + params["b"]
        i_g = jax.nn.sigmoid(gates[:, :H])
        f_g = jax.nn.sigmoid(gates[:, H:2 * H])
        g_g = jnp.tanh(gates[:, 2 * H:3 * H])
        o_g = jax.nn.sigmoid(gates[:, 3 * H:])
        c_new = f_g * c + i_g * g_g
        h_new = o_g * jnp.tanh(c_new)
        mask = (t < lengths)[:, None]
        h = jnp.where(mask, h_new, h)
        c = jnp.where(mask, c_new, c)
    logits = h @ params["wlin_T"] + params["blin"]
    return jax.nn.log_softmax(logits, axis=1)


def make_params(key, vocab_size, embedding_dim, n_hidden, n_out, batch_size,
                dtype=jnp.float32):
    # dtype=jnp.bfloat16 halves HBM/VMEM traffic and doubles MXU throughput on
    # v6e/v7x; recurrent state and accumulation stay f32 inside the kernel.
    ks = jax.random.split(key, 10)
    k = 1.0 / jnp.sqrt(jnp.float32(n_hidden))
    # Pretrained embedding table (frozen), as copied into nn.Embedding.
    embedding = jax.random.normal(ks[0], (vocab_size, embedding_dim),
                                  jnp.float32)
    # Reverse-direction LSTM weights (weight_*_l0_reverse), gate order i,f,g,o.
    wih = jax.random.uniform(ks[1], (4 * n_hidden, embedding_dim),
                             jnp.float32, -k, k)
    whh = jax.random.uniform(ks[2], (4 * n_hidden, n_hidden),
                             jnp.float32, -k, k)
    b_ih = jax.random.uniform(ks[3], (4 * n_hidden,), jnp.float32, -k, k)
    b_hh = jax.random.uniform(ks[4], (4 * n_hidden,), jnp.float32, -k, k)
    # init_hidden(): randn(2, B, H); index 1 = reverse direction.
    h0 = jax.random.normal(ks[5], (2, batch_size, n_hidden), jnp.float32)
    c0 = jax.random.normal(ks[6], (2, batch_size, n_hidden), jnp.float32)
    # Linear(n_hidden, n_out)
    kl = 1.0 / jnp.sqrt(jnp.float32(n_hidden))
    wlin = jax.random.uniform(ks[7], (n_out, n_hidden), jnp.float32, -kl, kl)
    blin = jax.random.uniform(ks[8], (n_out,), jnp.float32, -kl, kl)
    return {
        "embedding": embedding.astype(dtype),
        "wih_T": wih.T.astype(dtype),                      # (E, 4H)
        "whh_T": whh.T.astype(dtype),                      # (H, 4H)
        "b": (b_ih + b_hh).reshape(1, 4 * n_hidden),       # f32
        "h0_rev": h0[1], "c0_rev": c0[1],                  # (B, H) f32
        "wlin_T": wlin.T.astype(dtype),                    # (H, n_out)
        "blin": blin.reshape(1, n_out),                    # f32
    }


if __name__ == "__main__":
    vocab_size, embedding_dim, n_hidden, n_out = 100, 16, 32, 5
    T, B = 8, 8      # B multiple of 8 sublanes

    key = jax.random.PRNGKey(0)
    k_tok, k_par = jax.random.split(key)
    tokens = jax.random.randint(k_tok, (T, B), 0, vocab_size, dtype=jnp.int32)
    lengths = jnp.array([8, 7, 6, 5, 5, 4, 3, 2], dtype=jnp.int32)  # descending

    params = make_params(k_par, vocab_size, embedding_dim, n_hidden, n_out, B)

    # time_chunk=4 -> two time chunks: exercises the streamed/carried-state path
    out = jax.block_until_ready(
        lstm_classifier_forward(tokens, lengths, params, time_chunk=4))
    ref = jax.block_until_ready(reference_forward(tokens, lengths, params))

    assert out.shape == (B, n_out)
    assert jnp.allclose(out, ref, atol=1e-4, rtol=1e-4), (out, ref)
    print("KERNEL_OK")
</pallas_src>

<mosaic_0001>
module attributes {stable_mosaic.version = 11 : i64} {
  func.func @_lstm_head_kernel(%arg0: i32, %arg1: i32, %arg2: memref<4x8x16xf32, #tpu.memory_space<vmem>>, %arg3: memref<8x1xi32, #tpu.memory_space<vmem>>, %arg4: memref<16x128xf32, #tpu.memory_space<vmem>>, %arg5: memref<32x128xf32, #tpu.memory_space<vmem>>, %arg6: memref<1x128xf32, #tpu.memory_space<vmem>>, %arg7: memref<8x32xf32, #tpu.memory_space<vmem>>, %arg8: memref<8x32xf32, #tpu.memory_space<vmem>>, %arg9: memref<32x5xf32, #tpu.memory_space<vmem>>, %arg10: memref<1x5xf32, #tpu.memory_space<vmem>>, %arg11: memref<8x5xf32, #tpu.memory_space<vmem>>, %arg12: memref<32x128xf32, #tpu.memory_space<vmem>>, %arg13: memref<8x32xf32, #tpu.memory_space<vmem>>, %arg14: memref<8x32xf32, #tpu.memory_space<vmem>>) attributes {dimension_semantics = [#tpu.dimension_semantics<parallel>, #tpu.dimension_semantics<arbitrary>], iteration_bounds = array<i64: 1, 2>, scalar_prefetch = 0 : i64, scratch_operands = 3 : i64, tpu.core_type = #tpu.core_type<tc>, window_params = [{transform_indices = @transform_0, window_bounds = array<i64: 4, 8, 16>}, {transform_indices = @transform_1, window_bounds = array<i64: 8, 1>}, {pipeline_mode = #tpu.pipeline_mode<synchronous>, transform_indices = @transform_2, window_bounds = array<i64: 16, 128>}, {pipeline_mode = #tpu.pipeline_mode<synchronous>, transform_indices = @transform_3, window_bounds = array<i64: 32, 128>}, {pipeline_mode = #tpu.pipeline_mode<synchronous>, transform_indices = @transform_4, window_bounds = array<i64: 1, 128>}, {transform_indices = @transform_5, window_bounds = array<i64: 8, 32>}, {transform_indices = @transform_6, window_bounds = array<i64: 8, 32>}, {pipeline_mode = #tpu.pipeline_mode<synchronous>, transform_indices = @transform_7, window_bounds = array<i64: 32, 5>}, {pipeline_mode = #tpu.pipeline_mode<synchronous>, transform_indices = @transform_8, window_bounds = array<i64: 1, 5>}, {transform_indices = @transform_9, window_bounds = array<i64: 8, 5>}]} {
    %c0_i32 = arith.constant 0 : i32
    %0 = arith.cmpi eq, %arg1, %c0_i32 : i32
    %1 = arith.extui %0 : i1 to i32
    %c0_i32_0 = arith.constant 0 : i32
    %2 = arith.cmpi ne, %1, %c0_i32_0 : i32
    scf.if %2 {
      %c0_45 = arith.constant 0 : index
      %c0_46 = arith.constant 0 : index
      %136 = vector.load %arg7[%c0_45, %c0_46] : memref<8x32xf32, #tpu.memory_space<vmem>>, vector<8x32xf32>
      %c0_47 = arith.constant 0 : index
      %c0_48 = arith.constant 0 : index
      %137 = vector.load %arg13[%c0_47, %c0_48] : memref<8x32xf32, #tpu.memory_space<vmem>>, vector<8x32xf32>
      tpu.vector_store %arg13[%c0_47, %c0_48], %136 {strides = array<i32>} : memref<8x32xf32, #tpu.memory_space<vmem>>, vector<8x32xf32>,
      %c0_49 = arith.constant 0 : index
      %c0_50 = arith.constant 0 : index
      %138 = vector.load %arg8[%c0_49, %c0_50] : memref<8x32xf32, #tpu.memory_space<vmem>>, vector<8x32xf32>
      %c0_51 = arith.constant 0 : index
      %c0_52 = arith.constant 0 : index
      %139 = vector.load %arg14[%c0_51, %c0_52] : memref<8x32xf32, #tpu.memory_space<vmem>>, vector<8x32xf32>
      tpu.vector_store %arg14[%c0_51, %c0_52], %138 {strides = array<i32>} : memref<8x32xf32, #tpu.memory_space<vmem>>, vector<8x32xf32>,
    } else {
    }
    %c0 = arith.constant 0 : index
    %c0_1 = arith.constant 0 : index
    %3 = vector.load %arg4[%c0, %c0_1] : memref<16x128xf32, #tpu.memory_space<vmem>>, vector<16x128xf32>
    %c0_2 = arith.constant 0 : index
    %c0_3 = arith.constant 0 : index
    %4 = vector.load %arg5[%c0_2, %c0_3] : memref<32x128xf32, #tpu.memory_space<vmem>>, vector<32x128xf32>
    %c0_4 = arith.constant 0 : index
    %c0_5 = arith.constant 0 : index
    %5 = vector.load %arg6[%c0_4, %c0_5] : memref<1x128xf32, #tpu.memory_space<vmem>>, vector<1x128xf32>
    %c0_6 = arith.constant 0 : index
    %c0_7 = arith.constant 0 : index
    %6 = vector.load %arg3[%c0_6, %c0_7] : memref<8x1xi32, #tpu.memory_space<vmem>>, vector<8x1xi32>
    %7 = vector.shape_cast %6 : vector<8x1xi32> to vector<8x1xi32>
    %8 = vector.broadcast %7 : vector<8x1xi32> to vector<8x32xi32>
    %9 = tpu.iota {dimensions = array<i32: 1>} : vector<8x128xi32>
    %c64_i32 = arith.constant 64 : i32
    %10 = vector.broadcast %c64_i32 : i32 to vector<8x128xi32>
    %11 = arith.cmpi sge, %9, %10 : vector<8x128xi32>
    %c96_i32 = arith.constant 96 : i32
    %12 = vector.broadcast %c96_i32 : i32 to vector<8x128xi32>
    %13 = arith.cmpi slt, %9, %12 : vector<8x128xi32>
    %14 = arith.andi %11, %13 : vector<8x128xi1>
    %cst = arith.constant 1.000000e+00 : f32
    %cst_8 = arith.constant 5.000000e-01 : f32
    %15 = vector.broadcast %cst : f32 to vector<8x128xf32>
    %16 = vector.broadcast %cst_8 : f32 to vector<8x128xf32>
    %17 = arith.select %14, %15, %16 : vector<8x128xi1>, vector<8x128xf32>
    %cst_9 = arith.constant 0.000000e+00 : f32
    %cst_10 = arith.constant 5.000000e-01 : f32
    %18 = vector.broadcast %cst_9 : f32 to vector<8x128xf32>
    %19 = vector.broadcast %cst_10 : f32 to vector<8x128xf32>
    %20 = arith.select %14, %18, %19 : vector<8x128xi1>, vector<8x128xf32>
    %c1_i32 = arith.constant 1 : i32
    %21 = arith.subi %c1_i32, %arg1 : i32
    %c4_i32 = arith.constant 4 : i32
    %22 = arith.muli %21, %c4_i32 : i32
    %c0_11 = arith.constant 0 : index
    %c0_12 = arith.constant 0 : index
    %c0_13 = arith.constant 0 : index
    %23 = vector.load %arg2[%c0_11, %c0_12, %c0_13] : memref<4x8x16xf32, #tpu.memory_space<vmem>>, vector<4x8x16xf32>
    %24 = vector.shape_cast %23 : vector<4x8x16xf32> to vector<32x16xf32>
    %cst_14 = arith.constant dense<0.000000e+00> : vector<32x128xf32>
    %25 = tpu.matmul %24, %3, %cst_14 {dimension_numbers = #tpu.dot_dimension_numbers<[1], [0], [0], [1], [0, 0, 1, 1], [], []>} : vector<32x16xf32>, vector<16x128xf32>, vector<32x128xf32> -> vector<32x128xf32>
    %26 = vector.broadcast %5 : vector<1x128xf32> to vector<32x128xf32>
    %27 = arith.addf %25, %26 : vector<32x128xf32>
    %c0_15 = arith.constant 0 : index
    %c0_16 = arith.constant 0 : index
    %28 = vector.load %arg12[%c0_15, %c0_16] : memref<32x128xf32, #tpu.memory_space<vmem>>, vector<32x128xf32>
    tpu.vector_store %arg12[%c0_15, %c0_16], %27 {strides = array<i32>} : memref<32x128xf32, #tpu.memory_space<vmem>>, vector<32x128xf32>,
    %c0_17 = arith.constant 0 : index
    %c0_18 = arith.constant 0 : index
    %29 = vector.load %arg13[%c0_17, %c0_18] : memref<8x32xf32, #tpu.memory_space<vmem>>, vector<8x32xf32>
    %c0_19 = arith.constant 0 : index
    %c0_20 = arith.constant 0 : index
    %30 = vector.load %arg14[%c0_19, %c0_20] : memref<8x32xf32, #tpu.memory_space<vmem>>, vector<8x32xf32>
    %c0_i32_21 = arith.constant 0 : i32
    %c3_i32 = arith.constant 3 : i32
    %31 = arith.subi %c3_i32, %c0_i32_21 : i32
    %c8_i32 = arith.constant 8 : i32
    %32 = arith.muli %31, %c8_i32 : i32
    %33 = tpu.assume_multiple %32, 8 : i32
    %34 = arith.index_cast %33 : i32 to index
    %c0_22 = arith.constant 0 : index
    %35 = vector.load %arg12[%34, %c0_22] : memref<32x128xf32, #tpu.memory_space<vmem>>, vector<8x128xf32>
    %cst_23 = arith.constant dense<0.000000e+00> : vector<8x128xf32>
    %36 = tpu.matmul %29, %4, %cst_23 {dimension_numbers = #tpu.dot_dimension_numbers<[1], [0], [0], [1], [0, 0, 1, 1], [], []>} : vector<8x32xf32>, vector<32x128xf32>, vector<8x128xf32> -> vector<8x128xf32>
    %37 = arith.addf %35, %36 : vector<8x128xf32>
    %38 = arith.mulf %37, %17 : vector<8x128xf32>
    %39 = math.tanh %38 : vector<8x128xf32>
    %40 = arith.mulf %39, %17 : vector<8x128xf32>
    %41 = arith.addf %40, %20 : vector<8x128xf32>
    %42 = vector.extract_strided_slice %41 {offsets = [0, 0], sizes = [8, 32], strides = [1, 1]} : vector<8x128xf32> to vector<8x32xf32>
    %43 = vector.extract_strided_slice %41 {offsets = [0, 32], sizes = [8, 32], strides = [1, 1]} : vector<8x128xf32> to vector<8x32xf32>
    %44 = vector.extract_strided_slice %41 {offsets = [0, 64], sizes = [8, 32], strides = [1, 1]} : vector<8x128xf32> to vector<8x32xf32>
    %45 = vector.extract_strided_slice %41 {offsets = [0, 96], sizes = [8, 32], strides = [1, 1]} : vector<8x128xf32> to vector<8x32xf32>
    %46 = arith.mulf %43, %30 : vector<8x32xf32>
    %47 = arith.mulf %42, %44 : vector<8x32xf32>
    %48 = arith.addf %46, %47 : vector<8x32xf32>
    %49 = math.tanh %48 : vector<8x32xf32>
    %50 = arith.mulf %45, %49 : vector<8x32xf32>
    %51 = arith.addi %22, %31 : i32
    %52 = vector.broadcast %51 : i32 to vector<8x32xi32>
    %53 = arith.cmpi slt, %52, %8 : vector<8x32xi32>
    %54 = arith.select %53, %50, %29 : vector<8x32xi1>, vector<8x32xf32>
    %55 = arith.select %53, %48, %30 : vector<8x32xi1>, vector<8x32xf32>
    %c1_i32_24 = arith.constant 1 : i32
    %c3_i32_25 = arith.constant 3 : i32
    %56 = arith.subi %c3_i32_25, %c1_i32_24 : i32
    %c8_i32_26 = arith.constant 8 : i32
    %57 = arith.muli %56, %c8_i32_26 : i32
    %58 = tpu.assume_multiple %57, 8 : i32
    %59 = arith.index_cast %58 : i32 to index
    %c0_27 = arith.constant 0 : index
    %60 = vector.load %arg12[%59, %c0_27] : memref<32x128xf32, #tpu.memory_space<vmem>>, vector<8x128xf32>
    %cst_28 = arith.constant dense<0.000000e+00> : vector<8x128xf32>
    %61 = tpu.matmul %54, %4, %cst_28 {dimension_numbers = #tpu.dot_dimension_numbers<[1], [0], [0], [1], [0, 0, 1, 1], [], []>} : vector<8x32xf32>, vector<32x128xf32>, vector<8x128xf32> -> vector<8x128xf32>
    %62 = arith.addf %60, %61 : vector<8x128xf32>
    %63 = arith.mulf %62, %17 : vector<8x128xf32>
    %64 = math.tanh %63 : vector<8x128xf32>
    %65 = arith.mulf %64, %17 : vector<8x128xf32>
    %66 = arith.addf %65, %20 : vector<8x128xf32>
    %67 = vector.extract_strided_slice %66 {offsets = [0, 0], sizes = [8, 32], strides = [1, 1]} : vector<8x128xf32> to vector<8x32xf32>
    %68 = vector.extract_strided_slice %66 {offsets = [0, 32], sizes = [8, 32], strides = [1, 1]} : vector<8x128xf32> to vector<8x32xf32>
    %69 = vector.extract_strided_slice %66 {offsets = [0, 64], sizes = [8, 32], strides = [1, 1]} : vector<8x128xf32> to vector<8x32xf32>
    %70 = vector.extract_strided_slice %66 {offsets = [0, 96], sizes = [8, 32], strides = [1, 1]} : vector<8x128xf32> to vector<8x32xf32>
    %71 = arith.mulf %68, %55 : vector<8x32xf32>
    %72 = arith.mulf %67, %69 : vector<8x32xf32>
    %73 = arith.addf %71, %72 : vector<8x32xf32>
    %74 = math.tanh %73 : vector<8x32xf32>
    %75 = arith.mulf %70, %74 : vector<8x32xf32>
    %76 = arith.addi %22, %56 : i32
    %77 = vector.broadcast %76 : i32 to vector<8x32xi32>
    %78 = arith.cmpi slt, %77, %8 : vector<8x32xi32>
    %79 = arith.select %78, %75, %54 : vector<8x32xi1>, vector<8x32xf32>
    %80 = arith.select %78, %73, %55 : vector<8x32xi1>, vector<8x32xf32>
    %c2_i32 = arith.constant 2 : i32
    %c3_i32_29 = arith.constant 3 : i32
    %81 = arith.subi %c3_i32_29, %c2_i32 : i32
    %c8_i32_30 = arith.constant 8 : i32
    %82 = arith.muli %81, %c8_i32_30 : i32
    %83 = tpu.assume_multiple %82, 8 : i32
    %84 = arith.index_cast %83 : i32 to index
    %c0_31 = arith.constant 0 : index
    %85 = vector.load %arg12[%84, %c0_31] : memref<32x128xf32, #tpu.memory_space<vmem>>, vector<8x128xf32>
    %cst_32 = arith.constant dense<0.000000e+00> : vector<8x128xf32>
    %86 = tpu.matmul %79, %4, %cst_32 {dimension_numbers = #tpu.dot_dimension_numbers<[1], [0], [0], [1], [0, 0, 1, 1], [], []>} : vector<8x32xf32>, vector<32x128xf32>, vector<8x128xf32> -> vector<8x128xf32>
    %87 = arith.addf %85, %86 : vector<8x128xf32>
    %88 = arith.mulf %87, %17 : vector<8x128xf32>
    %89 = math.tanh %88 : vector<8x128xf32>
    %90 = arith.mulf %89, %17 : vector<8x128xf32>
    %91 = arith.addf %90, %20 : vector<8x128xf32>
    %92 = vector.extract_strided_slice %91 {offsets = [0, 0], sizes = [8, 32], strides = [1, 1]} : vector<8x128xf32> to vector<8x32xf32>
    %93 = vector.extract_strided_slice %91 {offsets = [0, 32], sizes = [8, 32], strides = [1, 1]} : vector<8x128xf32> to vector<8x32xf32>
    %94 = vector.extract_strided_slice %91 {offsets = [0, 64], sizes = [8, 32], strides = [1, 1]} : vector<8x128xf32> to vector<8x32xf32>
    %95 = vector.extract_strided_slice %91 {offsets = [0, 96], sizes = [8, 32], strides = [1, 1]} : vector<8x128xf32> to vector<8x32xf32>
    %96 = arith.mulf %93, %80 : vector<8x32xf32>
    %97 = arith.mulf %92, %94 : vector<8x32xf32>
    %98 = arith.addf %96, %97 : vector<8x32xf32>
    %99 = math.tanh %98 : vector<8x32xf32>
    %100 = arith.mulf %95, %99 : vector<8x32xf32>
    %101 = arith.addi %22, %81 : i32
    %102 = vector.broadcast %101 : i32 to vector<8x32xi32>
    %103 = arith.cmpi slt, %102, %8 : vector<8x32xi32>
    %104 = arith.select %103, %100, %79 : vector<8x32xi1>, vector<8x32xf32>
    %105 = arith.select %103, %98, %80 : vector<8x32xi1>, vector<8x32xf32>
    %c3_i32_33 = arith.constant 3 : i32
    %c3_i32_34 = arith.constant 3 : i32
    %106 = arith.subi %c3_i32_34, %c3_i32_33 : i32
    %c8_i32_35 = arith.constant 8 : i32
    %107 = arith.muli %106, %c8_i32_35 : i32
    %108 = tpu.assume_multiple %107, 8 : i32
    %109 = arith.index_cast %108 : i32 to index
    %c0_36 = arith.constant 0 : index
    %110 = vector.load %arg12[%109, %c0_36] : memref<32x128xf32, #tpu.memory_space<vmem>>, vector<8x128xf32>
    %cst_37 = arith.constant dense<0.000000e+00> : vector<8x128xf32>
    %111 = tpu.matmul %104, %4, %cst_37 {dimension_numbers = #tpu.dot_dimension_numbers<[1], [0], [0], [1], [0, 0, 1, 1], [], []>} : vector<8x32xf32>, vector<32x128xf32>, vector<8x128xf32> -> vector<8x128xf32>
    %112 = arith.addf %110, %111 : vector<8x128xf32>
    %113 = arith.mulf %112, %17 : vector<8x128xf32>
    %114 = math.tanh %113 : vector<8x128xf32>
    %115 = arith.mulf %114, %17 : vector<8x128xf32>
    %116 = arith.addf %115, %20 : vector<8x128xf32>
    %117 = vector.extract_strided_slice %116 {offsets = [0, 0], sizes = [8, 32], strides = [1, 1]} : vector<8x128xf32> to vector<8x32xf32>
    %118 = vector.extract_strided_slice %116 {offsets = [0, 32], sizes = [8, 32], strides = [1, 1]} : vector<8x128xf32> to vector<8x32xf32>
    %119 = vector.extract_strided_slice %116 {offsets = [0, 64], sizes = [8, 32], strides = [1, 1]} : vector<8x128xf32> to vector<8x32xf32>
    %120 = vector.extract_strided_slice %116 {offsets = [0, 96], sizes = [8, 32], strides = [1, 1]} : vector<8x128xf32> to vector<8x32xf32>
    %121 = arith.mulf %118, %105 : vector<8x32xf32>
    %122 = arith.mulf %117, %119 : vector<8x32xf32>
    %123 = arith.addf %121, %122 : vector<8x32xf32>
    %124 = math.tanh %123 : vector<8x32xf32>
    %125 = arith.mulf %120, %124 : vector<8x32xf32>
    %126 = arith.addi %22, %106 : i32
    %127 = vector.broadcast %126 : i32 to vector<8x32xi32>
    %128 = arith.cmpi slt, %127, %8 : vector<8x32xi32>
    %129 = arith.select %128, %125, %104 : vector<8x32xi1>, vector<8x32xf32>
    %130 = arith.select %128, %123, %105 : vector<8x32xi1>, vector<8x32xf32>
    %c4_i32_38 = arith.constant 4 : i32
    %c0_39 = arith.constant 0 : index
    %c0_40 = arith.constant 0 : index
    %131 = vector.load %arg13[%c0_39, %c0_40] : memref<8x32xf32, #tpu.memory_space<vmem>>, vector<8x32xf32>
    tpu.vector_store %arg13[%c0_39, %c0_40], %129 {strides = array<i32>} : memref<8x32xf32, #tpu.memory_space<vmem>>, vector<8x32xf32>,
    %c0_41 = arith.constant 0 : index
    %c0_42 = arith.constant 0 : index
    %132 = vector.load %arg14[%c0_41, %c0_42] : memref<8x32xf32, #tpu.memory_space<vmem>>, vector<8x32xf32>
    tpu.vector_store %arg14[%c0_41, %c0_42], %130 {strides = array<i32>} : memref<8x32xf32, #tpu.memory_space<vmem>>, vector<8x32xf32>,
    %c1_i32_43 = arith.constant 1 : i32
    %133 = arith.cmpi eq, %arg1, %c1_i32_43 : i32
    %134 = arith.extui %133 : i1 to i32
    %c0_i32_44 = arith.constant 0 : i32
    %135 = arith.cmpi ne, %134, %c0_i32_44 : i32
    scf.if %135 {
      %c0_45 = arith.constant 0 : index
      %c0_46 = arith.constant 0 : index
      %136 = vector.load %arg9[%c0_45, %c0_46] : memref<32x5xf32, #tpu.memory_space<vmem>>, vector<32x5xf32>
      %cst_47 = arith.constant dense<0.000000e+00> : vector<8x5xf32>
      %137 = tpu.matmul %129, %136, %cst_47 {dimension_numbers = #tpu.dot_dimension_numbers<[1], [0], [0], [1], [0, 0, 1, 1], [], []>} : vector<8x32xf32>, vector<32x5xf32>, vector<8x5xf32> -> vector<8x5xf32>
      %c0_48 = arith.constant 0 : index
      %c0_49 = arith.constant 0 : index
      %138 = vector.load %arg10[%c0_48, %c0_49] : memref<1x5xf32, #tpu.memory_space<vmem>>, vector<1x5xf32>
      %139 = vector.broadcast %138 : vector<1x5xf32> to vector<8x5xf32>
      %140 = arith.addf %137, %139 : vector<8x5xf32>
      %cst_50 = arith.constant dense<0xFF800000> : vector<8xf32>
      %141 = vector.multi_reduction <maximumf>, %140, %cst_50 [1] : vector<8x5xf32> to vector<8xf32>
      %142 = vector.shape_cast %141 : vector<8xf32> to vector<8x1xf32>
      %143 = vector.broadcast %142 : vector<8x1xf32> to vector<8x5xf32>
      %144 = arith.subf %140, %143 : vector<8x5xf32>
      %145 = math.exp %144 : vector<8x5xf32>
      %cst_51 = arith.constant dense<0.000000e+00> : vector<8xf32>
      %146 = vector.multi_reduction <add>, %145, %cst_51 [1] : vector<8x5xf32> to vector<8xf32>
      %147 = vector.shape_cast %146 : vector<8xf32> to vector<8x1xf32>
      %148 = math.log %147 : vector<8x1xf32>
      %149 = vector.broadcast %148 : vector<8x1xf32> to vector<8x5xf32>
      %150 = arith.subf %144, %149 : vector<8x5xf32>
      %c0_52 = arith.constant 0 : index
      %c0_53 = arith.constant 0 : index
      %151 = vector.load %arg11[%c0_52, %c0_53] : memref<8x5xf32, #tpu.memory_space<vmem>>, vector<8x5xf32>
      tpu.vector_store %arg11[%c0_52, %c0_53], %150 {strides = array<i32>} : memref<8x5xf32, #tpu.memory_space<vmem>>, vector<8x5xf32>,
    } else {
    }
    return
  }
  func.func @transform_0(%arg0: i32, %arg1: i32) -> (i32, i32, i32) {
    %c1_i32 = arith.constant 1 : i32
    %0 = arith.subi %c1_i32, %arg1 : i32
    %c0_i32 = arith.constant 0 : i32
    %c0_i32_0 = arith.constant 0 : i32
    return %0, %arg0, %c0_i32 : i32, i32, i32
  }
  func.func @transform_1(%arg0: i32, %arg1: i32) -> (i32, i32) {
    %c0_i32 = arith.constant 0 : i32
    %c0_i32_0 = arith.constant 0 : i32
    return %arg0, %c0_i32 : i32, i32
  }
  func.func @transform_2(%arg0: i32, %arg1: i32) -> (i32, i32) {
    %c0_i32 = arith.constant 0 : i32
    %c0_i32_0 = arith.constant 0 : i32
    %c0_i32_1 = arith.constant 0 : i32
    return %c0_i32, %c0_i32_0 : i32, i32
  }
  func.func @transform_3(%arg0: i32, %arg1: i32) -> (i32, i32) {
    %c0_i32 = arith.constant 0 : i32
    %c0_i32_0 = arith.constant 0 : i32
    %c0_i32_1 = arith.constant 0 : i32
    return %c0_i32, %c0_i32_0 : i32, i32
  }
  func.func @transform_4(%arg0: i32, %arg1: i32) -> (i32, i32) {
    %c0_i32 = arith.constant 0 : i32
    %c0_i32_0 = arith.constant 0 : i32
    %c0_i32_1 = arith.constant 0 : i32
    return %c0_i32, %c0_i32_0 : i32, i32
  }
  func.func @transform_5(%arg0: i32, %arg1: i32) -> (i32, i32) {
    %c0_i32 = arith.constant 0 : i32
    %c0_i32_0 = arith.constant 0 : i32
    return %arg0, %c0_i32 : i32, i32
  }
  func.func @transform_6(%arg0: i32, %arg1: i32) -> (i32, i32) {
    %c0_i32 = arith.constant 0 : i32
    %c0_i32_0 = arith.constant 0 : i32
    return %arg0, %c0_i32 : i32, i32
  }
  func.func @transform_7(%arg0: i32, %arg1: i32) -> (i32, i32) {
    %c0_i32 = arith.constant 0 : i32
    %c0_i32_0 = arith.constant 0 : i32
    %c0_i32_1 = arith.constant 0 : i32
    return %c0_i32, %c0_i32_0 : i32, i32
  }
  func.func @transform_8(%arg0: i32, %arg1: i32) -> (i32, i32) {
    %c0_i32 = arith.constant 0 : i32
    %c0_i32_0 = arith.constant 0 : i32
    %c0_i32_1 = arith.constant 0 : i32
    return %c0_i32, %c0_i32_0 : i32, i32
  }
  func.func @transform_9(%arg0: i32, %arg1: i32) -> (i32, i32) {
    %c0_i32 = arith.constant 0 : i32
    %c0_i32_0 = arith.constant 0 : i32
    return %arg0, %c0_i32 : i32, i32
  }
}

</mosaic_0001>

<llo_original>
// kernel: tpu_custom_call.1
$region0: #{tpu_custom_call.1}
  #allocation0 [shape = 'u32[]', space=smem, size = 0x4, offset = 0x4, fixed_abs, tag = 'smem constant byte address 0x4 - core index']
  #allocation1 [shape = 'u32[144,128]{1,0:T(1,128)}', space=vmem, size = 0x12000, scoped, tag = 'internal scratch']
  #allocation2 [shape = 'f32[32,128]{1,0:T(8,128)}', space=vmem, size = 0x4000, scoped, tag = 'scratch operand']
  #allocation3 [shape = 'f32[8,32]{1,0:T(8,128)}', space=vmem, size = 0x1000, scoped, tag = 'scratch operand']
  #allocation4 [shape = 'f32[8,32]{1,0:T(8,128)}', space=vmem, size = 0x1000, scoped, tag = 'scratch operand']
  %s0 = inlined_call_operand.hbm [shape: f32[8,8,16], index: 0, kind: input, shape index: {}]
  %s1 = inlined_call_operand.vmem [shape: s32[8,1], index: 1, kind: input, shape index: {}]
  %s2 = inlined_call_operand.vmem [shape: f32[16,128], index: 2, kind: input, shape index: {}]
  %s3 = inlined_call_operand.vmem [shape: f32[32,128], index: 3, kind: input, shape index: {}]
  %s4 = inlined_call_operand.hbm [shape: f32[1,128], index: 4, kind: input, shape index: {}]
  %s5 = inlined_call_operand.vmem [shape: f32[8,32], index: 5, kind: input, shape index: {}]
  %s6 = inlined_call_operand.hbm [shape: f32[8,32], index: 6, kind: input, shape index: {}]
  %s7 = inlined_call_operand.vmem [shape: f32[32,5], index: 7, kind: input, shape index: {}]
  %s8 = inlined_call_operand.vmem [shape: f32[1,5], index: 8, kind: input, shape index: {}]
  %s9 = inlined_call_operand.hbm [shape: f32[8,5], index: 9, kind: output, shape index: {}]
  %s10 = sld [smem:[#allocation0]]
  $region89: #{tpu_custom_call.1} parent=0
    _
  %s12 = ssub.s32 1, %s10
  %s13 = scalar_select 0, %s12, %s10
  $region1: #{tpu_custom_call.1} parent=0
    #allocation5 [shape = 'u8[32768]{0}', space=vmem, size = 0x8000, scoped, tag = 'input window, operand 0']
    #allocation6 [shape = 's32[2]{0}', space=sflag, size = 0x8, scoped, tag = 'scoped memory for tpu_custom_call.1']
    #allocation7 [shape = 's32[2]{0}', space=sflag, size = 0x8, scoped, tag = 'scoped memory for tpu_custom_call.1']
    #allocation8 [shape = 'u8[512]{0}', space=vmem, size = 0x400, scoped, tag = 'input window, operand 4, single buffered']
    #allocation9 [shape = 's32[1]{0}', space=sflag, size = 0x4, scoped, tag = 'scoped memory for tpu_custom_call.1']
    #allocation10 [shape = 'u8[4096]{0}', space=vmem, size = 0x1000, scoped, tag = 'input window, operand 6, single buffered']
    #allocation11 [shape = 'u8[4096]{0}', space=vmem, size = 0x1000, scoped, tag = 'output window, operand 0, single buffered']
    %14 = vsyncpa [#allocation6], 0
    %s15 = scalar_lea.sflag [#allocation6], 1
    %16 = vsyncpa %s15, 0
    %17 = vsyncpa [#allocation9], 0
    %18 = vsyncpa [#allocation7], 0
    loop: start=0, step=1, limit=4
    $region2: #{tpu_custom_call.1} parent=1 // loop_pre_header
      _
    $region3: #{tpu_custom_call.1} parent=1 // loop_header
      %s20 = sphi 0, %s24
      %p21 = scmp.ge.s32.totalorder %s20, 4
      %s27 = sphi 0, %s39
      %s28 = sphi 0, %s35
      %s29 = sphi 0, %s27
      %s30 = sphi 0, %s28
      %s31 = sphi 0, %s29
      %s32 = sphi 0, %s30
      %s46 = sphi 0, %s48
      %s49 = sphi 0, %s46
      %s50 = sphi 0, %s49
      %s66 = sphi 0, %s50
      %s72 = sphi 0, %s74
      %s75 = sphi 0, %s72
      %s76 = sphi 0, %s75
      %s92 = sphi 0, %s76
      %s96 = sphi 0, %s96
      %s98 = sphi 0, %s96
      %s99 = sphi 0, %s98
      %s113 = sphi 0, %s99
      %s117 = sphi 0, %s117
      %s119 = sphi 0, %s117
      %s120 = sphi 0, %s119
      %s134 = sphi 0, %s120
      %s138 = sphi 0, %s138
      %s140 = sphi 0, %s138
      %s141 = sphi 0, %s140
      %s155 = sphi 0, %s141
      %s161 = sphi 0, %s163
      %s164 = sphi 0, %s161
      %s165 = sphi 0, %s164
      %s181 = sphi 0, %s165
      %s187 = sphi 0, %s189
      %s190 = sphi 0, %s187
      %s191 = sphi 0, %s190
      %s207 = sphi 0, %s191
      %s211 = sphi 0, %s211
      %s213 = sphi 0, %s211
      %s214 = sphi 0, %s213
      %s228 = sphi 0, %s214
      %s232 = sphi 0, %s232
      %s234 = sphi 0, %s232
      %s235 = sphi 0, %s234
      %s249 = sphi 0, %s235
      %s255 = sphi 0, %s257
      %s258 = sphi 0, %s255
      %s259 = sphi 0, %s258
      %s275 = sphi 0, %s259
    $region4: #{tpu_custom_call.1} parent=1 // loop_header_branch
      %23 = sbr.rel (%p21) target = $region8
    $region5: #{tpu_custom_call.1} parent=1 // loop_body
      %s25 = ssub.s32 %s20, 1
      %s26 = ssub.s32 %s20, 2
      %s33 = sadd.s32 1, %s28
      %p34 = scmp.ge.s32.totalorder %s33, 2
      %s35 = scalar_select %p34, 0, %s33
      %s36 = sadd.s32 1, %s27
      %s37 = scalar_select %p34, %s36, %s27
      %p38 = scmp.ge.s32.totalorder %s37, 1
      %s39 = scalar_select %p38, 0, %s37
      %s40 = ssub.s32 1, %s28
      %s41 = ssub.s32 1, %s35
      %s42 = ssub.s32 %s40, %s41
      %s43 = ssub.s32 %s27, %s39
      %s44 = sor.u32 %s42, %s43
      %p45 = scmp.eq.s32.totalorder %s44, 0
      %s47 = sadd.s32 %s46, 1
      %s48 = scalar_select %p45, %s46, %s47
      %p51 = pneg %p45
      %p52 = scmp.eq.s32.totalorder %s20, 1
      %p53 = por %p51, %p52
      %p54 = scmp.ne.s32.totalorder %s46, %s49
      %p55 = scmp.eq.s32.totalorder %s20, 0
      %p56 = por %p54, %p55
      %p57 = scmp.ne.s32.totalorder %s46, %s49
      %p58 = scmp.eq.s32.totalorder %s25, 1
      %p59 = por %p57, %p58
      %p60 = scmp.ne.s32.totalorder %s49, %s50
      %p61 = scmp.eq.s32.totalorder %s25, 0
      %p62 = por %p60, %p61
      %p63 = scmp.ne.s32.totalorder %s49, %s50
      %p64 = scmp.eq.s32.totalorder %s26, 1
      %p65 = por %p63, %p64
      %p67 = scmp.ne.s32.totalorder %s50, %s66
      %p68 = scmp.eq.s32.totalorder %s26, 0
      %p69 = por %p67, %p68
      %s70 = ssub.s32 %s27, %s39
      %p71 = scmp.eq.s32.totalorder %s70, 0
      %s73 = sadd.s32 %s72, 1
      %s74 = scalar_select %p71, %s72, %s73
      %p77 = pneg %p71
      %p78 = scmp.eq.s32.totalorder %s20, 1
      %p79 = por %p77, %p78
      %p80 = scmp.ne.s32.totalorder %s72, %s75
      %p81 = scmp.eq.s32.totalorder %s20, 0
      %p82 = por %p80, %p81
      %p83 = scmp.ne.s32.totalorder %s72, %s75
      %p84 = scmp.eq.s32.totalorder %s25, 1
      %p85 = por %p83, %p84
      %p86 = scmp.ne.s32.totalorder %s75, %s76
      %p87 = scmp.eq.s32.totalorder %s25, 0
      %p88 = por %p86, %p87
      %p89 = scmp.ne.s32.totalorder %s75, %s76
      %p90 = scmp.eq.s32.totalorder %s26, 1
      %p91 = por %p89, %p90
      %p93 = scmp.ne.s32.totalorder %s76, %s92
      %p94 = scmp.eq.s32.totalorder %s26, 0
      %p95 = por %p93, %p94
      %s97 = sadd.s32 %s96, 1
      %p100 = scmp.eq.s32.totalorder %s20, 1
      %p101 = scmp.ne.s32.totalorder %s96, %s98
      %p102 = scmp.eq.s32.totalorder %s20, 0
      %p103 = por %p101, %p102
      %p104 = scmp.ne.s32.totalorder %s96, %s98
      %p105 = scmp.eq.s32.totalorder %s25, 1
      %p106 = por %p104, %p105
      %p107 = scmp.ne.s32.totalorder %s98, %s99
      %p108 = scmp.eq.s32.totalorder %s25, 0
      %p109 = por %p107, %p108
      %p110 = scmp.ne.s32.totalorder %s98, %s99
      %p111 = scmp.eq.s32.totalorder %s26, 1
      %p112 = por %p110, %p111
      %p114 = scmp.ne.s32.totalorder %s99, %s113
      %p115 = scmp.eq.s32.totalorder %s26, 0
      %p116 = por %p114, %p115
      %s118 = sadd.s32 %s117, 1
      %p121 = scmp.eq.s32.totalorder %s20, 1
      %p122 = scmp.ne.s32.totalorder %s117, %s119
      %p123 = scmp.eq.s32.totalorder %s20, 0
      %p124 = por %p122, %p123
      %p125 = scmp.ne.s32.totalorder %s117, %s119
      %p126 = scmp.eq.s32.totalorder %s25, 1
      %p127 = por %p125, %p126
      %p128 = scmp.ne.s32.totalorder %s119, %s120
      %p129 = scmp.eq.s32.totalorder %s25, 0
      %p130 = por %p128, %p129
      %p131 = scmp.ne.s32.totalorder %s119, %s120
      %p132 = scmp.eq.s32.totalorder %s26, 1
      %p133 = por %p131, %p132
      %p135 = scmp.ne.s32.totalorder %s120, %s134
      %p136 = scmp.eq.s32.totalorder %s26, 0
      %p137 = por %p135, %p136
      %s139 = sadd.s32 %s138, 1
      %p142 = scmp.eq.s32.totalorder %s20, 1
      %p143 = scmp.ne.s32.totalorder %s138, %s140
      %p144 = scmp.eq.s32.totalorder %s20, 0
      %p145 = por %p143, %p144
      %p146 = scmp.ne.s32.totalorder %s138, %s140
      %p147 = scmp.eq.s32.totalorder %s25, 1
      %p148 = por %p146, %p147
      %p149 = scmp.ne.s32.totalorder %s140, %s141
      %p150 = scmp.eq.s32.totalorder %s25, 0
      %p151 = por %p149, %p150
      %p152 = scmp.ne.s32.totalorder %s140, %s141
      %p153 = scmp.eq.s32.totalorder %s26, 1
      %p154 = por %p152, %p153
      %p156 = scmp.ne.s32.totalorder %s141, %s155
      %p157 = scmp.eq.s32.totalorder %s26, 0
      %p158 = por %p156, %p157
      %s159 = ssub.s32 %s27, %s39
      %p160 = scmp.eq.s32.totalorder %s159, 0
      %s162 = sadd.s32 %s161, 1
      %s163 = scalar_select %p160, %s161, %s162
      %p166 = pneg %p160
      %p167 = scmp.eq.s32.totalorder %s20, 1
      %p168 = por %p166, %p167
      %p169 = scmp.ne.s32.totalorder %s161, %s164
      %p170 = scmp.eq.s32.totalorder %s20, 0
      %p171 = por %p169, %p170
      %p172 = scmp.ne.s32.totalorder %s161, %s164
      %p173 = scmp.eq.s32.totalorder %s25, 1
      %p174 = por %p172, %p173
      %p175 = scmp.ne.s32.totalorder %s164, %s165
      %p176 = scmp.eq.s32.totalorder %s25, 0
      %p177 = por %p175, %p176
      %p178 = scmp.ne.s32.totalorder %s164, %s165
      %p179 = scmp.eq.s32.totalorder %s26, 1
      %p180 = por %p178, %p179
      %p182 = scmp.ne.s32.totalorder %s165, %s181
      %p183 = scmp.eq.s32.totalorder %s26, 0
      %p184 = por %p182, %p183
      %s185 = ssub.s32 %s27, %s39
      %p186 = scmp.eq.s32.totalorder %s185, 0
      %s188 = sadd.s32 %s187, 1
      %s189 = scalar_select %p186, %s187, %s188
      %p192 = pneg %p186
      %p193 = scmp.eq.s32.totalorder %s20, 1
      %p194 = por %p192, %p193
      %p195 = scmp.ne.s32.totalorder %s187, %s190
      %p196 = scmp.eq.s32.totalorder %s20, 0
      %p197 = por %p195, %p196
      %p198 = scmp.ne.s32.totalorder %s187, %s190
      %p199 = scmp.eq.s32.totalorder %s25, 1
      %p200 = por %p198, %p199
      %p201 = scmp.ne.s32.totalorder %s190, %s191
      %p202 = scmp.eq.s32.totalorder %s25, 0
      %p203 = por %p201, %p202
      %p204 = scmp.ne.s32.totalorder %s190, %s191
      %p205 = scmp.eq.s32.totalorder %s26, 1
      %p206 = por %p204, %p205
      %p208 = scmp.ne.s32.totalorder %s191, %s207
      %p209 = scmp.eq.s32.totalorder %s26, 0
      %p210 = por %p208, %p209
      %s212 = sadd.s32 %s211, 1
      %p215 = scmp.eq.s32.totalorder %s20, 1
      %p216 = scmp.ne.s32.totalorder %s211, %s213
      %p217 = scmp.eq.s32.totalorder %s20, 0
      %p218 = por %p216, %p217
      %p219 = scmp.ne.s32.totalorder %s211, %s213
      %p220 = scmp.eq.s32.totalorder %s25, 1
      %p221 = por %p219, %p220
      %p222 = scmp.ne.s32.totalorder %s213, %s214
      %p223 = scmp.eq.s32.totalorder %s25, 0
      %p224 = por %p222, %p223
      %p225 = scmp.ne.s32.totalorder %s213, %s214
      %p226 = scmp.eq.s32.totalorder %s26, 1
      %p227 = por %p225, %p226
      %p229 = scmp.ne.s32.totalorder %s214, %s228
      %p230 = scmp.eq.s32.totalorder %s26, 0
      %p231 = por %p229, %p230
      %s233 = sadd.s32 %s232, 1
      %p236 = scmp.eq.s32.totalorder %s20, 1
      %p237 = scmp.ne.s32.totalorder %s232, %s234
      %p238 = scmp.eq.s32.totalorder %s20, 0
      %p239 = por %p237, %p238
      %p240 = scmp.ne.s32.totalorder %s232, %s234
      %p241 = scmp.eq.s32.totalorder %s25, 1
      %p242 = por %p240, %p241
      %p243 = scmp.ne.s32.totalorder %s234, %s235
      %p244 = scmp.eq.s32.totalorder %s25, 0
      %p245 = por %p243, %p244
      %p246 = scmp.ne.s32.totalorder %s234, %s235
      %p247 = scmp.eq.s32.totalorder %s26, 1
      %p248 = por %p246, %p247
      %p250 = scmp.ne.s32.totalorder %s235, %s249
      %p251 = scmp.eq.s32.totalorder %s26, 0
      %p252 = por %p250, %p251
      %s253 = ssub.s32 %s27, %s39
      %p254 = scmp.eq.s32.totalorder %s253, 0
      %s256 = sadd.s32 %s255, 1
      %s257 = scalar_select %p254, %s255, %s256
      %p260 = pneg %p254
      %p261 = scmp.eq.s32.totalorder %s20, 1
      %p262 = por %p260, %p261
      %p263 = scmp.ne.s32.totalorder %s255, %s258
      %p264 = scmp.eq.s32.totalorder %s20, 0
      %p265 = por %p263, %p264
      %p266 = scmp.ne.s32.totalorder %s255, %s258
      %p267 = scmp.eq.s32.totalorder %s25, 1
      %p268 = por %p266, %p267
      %p269 = scmp.ne.s32.totalorder %s258, %s259
      %p270 = scmp.eq.s32.totalorder %s25, 0
      %p271 = por %p269, %p270
      %p272 = scmp.ne.s32.totalorder %s258, %s259
      %p273 = scmp.eq.s32.totalorder %s26, 1
      %p274 = por %p272, %p273
      %p276 = scmp.ne.s32.totalorder %s259, %s275
      %p277 = scmp.eq.s32.totalorder %s26, 0
      %p278 = por %p276, %p277
      %p279 = scmp.le.s32.totalorder 1, %s20
      %p280 = scmp.lt.s32.totalorder %s20, 3
      %p281 = pnand %p279, %p280
      %p282 = pneg %p281
      // Predicated region
      $region9: #{tpu_custom_call.1} parent=5 // pred_check
        _
      $region10: #{tpu_custom_call.1} parent=5 // pred_check_branch
        %284 = sbr.rel (%p281) target = $region12
      $region11: #{tpu_custom_call.1} parent=5 // pred_region
        %s285 = ssub.s32 %s20, 1
        // Predicated region
        $region13: #{tpu_custom_call.1} parent=11 // pred_check
          %p286 = pneg %p88
        $region14: #{tpu_custom_call.1} parent=11 // pred_check_branch
          %288 = sbr.rel (%p286) target = $region16
        $region15: #{tpu_custom_call.1} parent=11 // pred_region
          %p289 = scmp.lt.s32.totalorder %s29, 0
          %s290 = scalar_select %p289, %s29, 0
          %s291 = smul.addr %s290, 8
          %s292 = scalar_lea.vmem %s1, %s291
        $region16: #{tpu_custom_call.1} parent=11 // pred_fallthru
          _
        // Predicated region
        $region17: #{tpu_custom_call.1} parent=11 // pred_check
          %p293 = pneg %p109
        $region18: #{tpu_custom_call.1} parent=11 // pred_check_branch
          %295 = sbr.rel (%p293) target = $region20
        $region19: #{tpu_custom_call.1} parent=11 // pred_region
          _
        $region20: #{tpu_custom_call.1} parent=11 // pred_fallthru
          _
        // Predicated region
        $region21: #{tpu_custom_call.1} parent=11 // pred_check
          %p296 = pneg %p130
        $region22: #{tpu_custom_call.1} parent=11 // pred_check_branch
          %298 = sbr.rel (%p296) target = $region24
        $region23: #{tpu_custom_call.1} parent=11 // pred_region
          _
        $region24: #{tpu_custom_call.1} parent=11 // pred_fallthru
          _
        // Predicated region
        $region25: #{tpu_custom_call.1} parent=11 // pred_check
          %p299 = pneg %p151
        $region26: #{tpu_custom_call.1} parent=11 // pred_check_branch
          %301 = sbr.rel (%p299) target = $region28
        $region27: #{tpu_custom_call.1} parent=11 // pred_region
          %s303 = ssub.s32 16, 16
          %304 = vsyncadd [#allocation9], %s303
          %s306 = sshll.u32 [#allocation8], 4
          %s307 = int_to_ptr.vmem [resolvable:$true] %s306
          %309 = dma.hbm_to_vmem [thread:$0]  %s4, 16, %s307, [#allocation9]
        $region28: #{tpu_custom_call.1} parent=11 // pred_fallthru
          _
        // Predicated region
        $region29: #{tpu_custom_call.1} parent=11 // pred_check
          %p310 = pneg %p177
        $region30: #{tpu_custom_call.1} parent=11 // pred_check_branch
          %312 = sbr.rel (%p310) target = $region32
        $region31: #{tpu_custom_call.1} parent=11 // pred_region
          %p313 = scmp.lt.s32.totalorder %s29, 0
          %s314 = scalar_select %p313, %s29, 0
          %s315 = smul.addr %s314, 8
          %s316 = scalar_lea.vmem %s5, %s315
        $region32: #{tpu_custom_call.1} parent=11 // pred_fallthru
          _
        // Predicated region
        $region33: #{tpu_custom_call.1} parent=11 // pred_check
          %p317 = pneg %p203
        $region34: #{tpu_custom_call.1} parent=11 // pred_check_branch
          %319 = sbr.rel (%p317) target = $region36
        $region35: #{tpu_custom_call.1} parent=11 // pred_region
          %s321 = ssub.s32 128, 128
          %322 = vsyncadd [#allocation9], %s321
          %s323 = smul.addr %s29, 128
          %s324 = scalar_lea.hbm %s6, %s323
          %s326 = sshll.u32 [#allocation10], 4
          %s327 = int_to_ptr.vmem [resolvable:$true] %s326
          %329 = dma.hbm_to_vmem [thread:$0]  %s324, 128, %s327, [#allocation9]
        $region36: #{tpu_custom_call.1} parent=11 // pred_fallthru
          _
        // Predicated region
        $region37: #{tpu_custom_call.1} parent=11 // pred_check
          %p330 = pneg %p224
        $region38: #{tpu_custom_call.1} parent=11 // pred_check_branch
          %332 = sbr.rel (%p330) target = $region40
        $region39: #{tpu_custom_call.1} parent=11 // pred_region
          _
        $region40: #{tpu_custom_call.1} parent=11 // pred_fallthru
          _
        // Predicated region
        $region41: #{tpu_custom_call.1} parent=11 // pred_check
          %p333 = pneg %p245
        $region42: #{tpu_custom_call.1} parent=11 // pred_check_branch
          %335 = sbr.rel (%p333) target = $region44
        $region43: #{tpu_custom_call.1} parent=11 // pred_region
          _
        $region44: #{tpu_custom_call.1} parent=11 // pred_fallthru
          _
      $region12: #{tpu_custom_call.1} parent=5 // pred_fallthru
        _
      %p336 = scmp.lt.s32.totalorder %s20, 2
      // Predicated region
      $region45: #{tpu_custom_call.1} parent=5 // pred_check
        %p337 = pneg %p336
      $region46: #{tpu_custom_call.1} parent=5 // pred_check_branch
        %339 = sbr.rel (%p337) target = $region48
      $region47: #{tpu_custom_call.1} parent=5 // pred_region
        // Predicated region
        $region49: #{tpu_custom_call.1} parent=47 // pred_check
          %p340 = pneg %p56
        $region50: #{tpu_custom_call.1} parent=47 // pred_check_branch
          %342 = sbr.rel (%p340) target = $region52
        $region51: #{tpu_custom_call.1} parent=47 // pred_region
          %s343 = sand.u32 %s46, 1
          %s344 = scalar_lea.sflag [#allocation6], %s343
          %s345 = sand.u32 %s46, 1
          %s346 = smul.addr %s345, 32
          %s347 = scalar_lea.vmem [#allocation5], %s346
          %s348 = ssub.s32 1, %s28
          %s349 = smul.u32 4, %s348
          %s351 = ssub.s32 512, 512
          %352 = vsyncadd %s344, %s351
          %s353 = sadd.s32 %s27, %s349
          %s354 = smul.addr %s353, 128
          %s355 = scalar_lea.hbm %s0, %s354
          %s356 = sshll.u32 %s347, 4
          %s357 = int_to_ptr.vmem [resolvable:$true] %s356
          %362 = dma.hbm_to_vmem [thread:$0]  %s355, 512, %s357, %s344, 128, 128, 8
        $region52: #{tpu_custom_call.1} parent=47 // pred_fallthru
          _
      $region48: #{tpu_custom_call.1} parent=5 // pred_fallthru
        _
      %p363 = scmp.le.s32.totalorder 1, %s20
      %p364 = scmp.lt.s32.totalorder %s20, 3
      %p365 = pnand %p363, %p364
      %p366 = pneg %p365
      // Predicated region
      $region53: #{tpu_custom_call.1} parent=5 // pred_check
        _
      $region54: #{tpu_custom_call.1} parent=5 // pred_check_branch
        %368 = sbr.rel (%p365) target = $region56
      $region55: #{tpu_custom_call.1} parent=5 // pred_region
        %s369 = ssub.s32 %s20, 1
        %s370 = sand.u32 %s49, 1
        %s371 = scalar_lea.sflag [#allocation6], %s370
        %s372 = sand.u32 %s49, 1
        %s373 = smul.addr %s372, 32
        %s374 = scalar_lea.vmem [#allocation5], %s373
        // Predicated region
        $region57: #{tpu_custom_call.1} parent=55 // pred_check
          %p375 = pneg %p62
        $region58: #{tpu_custom_call.1} parent=55 // pred_check_branch
          %377 = sbr.rel (%p375) target = $region60
        $region59: #{tpu_custom_call.1} parent=55 // pred_region
          %378 = dma.done %s371, 512
        $region60: #{tpu_custom_call.1} parent=55 // pred_fallthru
          _
        // Predicated region
        $region61: #{tpu_custom_call.1} parent=55 // pred_check
          %p379 = pneg %p151
        $region62: #{tpu_custom_call.1} parent=55 // pred_check_branch
          %381 = sbr.rel (%p379) target = $region64
        $region63: #{tpu_custom_call.1} parent=55 // pred_region
          %382 = dma.done [#allocation9], 16
        $region64: #{tpu_custom_call.1} parent=55 // pred_fallthru
          _
        // Predicated region
        $region65: #{tpu_custom_call.1} parent=55 // pred_check
          %p383 = pneg %p203
        $region66: #{tpu_custom_call.1} parent=55 // pred_check_branch
          %385 = sbr.rel (%p383) target = $region68
        $region67: #{tpu_custom_call.1} parent=55 // pred_region
          %386 = dma.done [#allocation9], 128
        $region68: #{tpu_custom_call.1} parent=55 // pred_fallthru
          _
        %s387 = sand.u32 %s49, 1
        %s388 = scalar_lea.sflag [#allocation6], %s387
        %s389 = sand.u32 %s49, 1
        %s390 = smul.addr %s389, 32
        %s391 = scalar_lea.vmem [#allocation5], %s390
        %p392 = pneg %p62
        %p393 = pneg %p59
        %p394 = scmp.lt.s32.totalorder %s29, 0
        %s395 = scalar_select %p394, %s29, 0
        %s396 = smul.addr %s395, 8
        %s397 = scalar_lea.vmem %s1, %s396
        %p398 = pneg %p88
        %p399 = pneg %p85
        %p400 = pneg %p109
        %p401 = pneg %p106
        %p402 = pneg %p130
        %p403 = pneg %p127
        %p404 = pneg %p151
        %p405 = pneg %p148
        %p406 = scmp.lt.s32.totalorder %s29, 0
        %s407 = scalar_select %p406, %s29, 0
        %s408 = smul.addr %s407, 8
        %s409 = scalar_lea.vmem %s5, %s408
        %p410 = pneg %p177
        %p411 = pneg %p174
        %p412 = pneg %p203
        %p413 = pneg %p200
        %p414 = pneg %p224
        %p415 = pneg %p221
        %p416 = pneg %p245
        %p417 = pneg %p242
        %p418 = pneg %p271
        %p419 = pneg %p268
        %s420 = ssub.s32 1, %s30
        %s421 = smul.u32 4, %s420
        %p422 = scmp.lt.s32.totalorder %s29, 0
        %s423 = scalar_select %p422, %s29, 0
        %s424 = smul.addr %s423, 8
        %s425 = scalar_lea.vmem %s1, %s424
        %p426 = scmp.lt.s32.totalorder %s29, 0
        %s427 = scalar_select %p426, %s29, 0
        %s428 = smul.addr %s427, 8
        %s429 = scalar_lea.vmem %s5, %s428
        %p430 = scmp.eq.s32.totalorder %s30, 0
        // Predicated region
        $region69: #{tpu_custom_call.1} parent=55 // pred_check
          %p431 = pneg %p430
        $region70: #{tpu_custom_call.1} parent=55 // pred_check_branch
          %433 = sbr.rel (%p431) target = $region72
        $region71: #{tpu_custom_call.1} parent=55 // pred_region
          %v434 = vld [vmem:[%s429] sm:$0xff]
          %vm435 = vcmask 261120
          %436 = vst.msk [vmem:[#allocation3] sm:$0xff] %vm435, %v434
          %v437 = vld [vmem:[#allocation10] sm:$0xff]
          %438 = vst.msk [vmem:[#allocation4] sm:$0xff] %vm435, %v437
        $region72: #{tpu_custom_call.1} parent=55 // pred_fallthru
          _
        %v439 = vld [vmem:[%s2] sm:$0xff]
        %v440 = vld [vmem:[%s2 + $0x8] sm:$0xff]
        %v441 = vld [vmem:[%s3] sm:$0xff]
        %v442 = vld [vmem:[%s3 + $0x8] sm:$0xff]
        %v443 = vld [vmem:[%s3 + $0x10] sm:$0xff]
        %v444 = vld [vmem:[%s3 + $0x18] sm:$0xff]
        %v445 = vld [vmem:[#allocation8] sm:$0x1]
        %v446 = vld [vmem:[%s425] sm:$0xff]
        %447 = vset.pattern.permute.xlu0 0
        %448 = vperm.xlu0 %447, %v446
        %v449 = vpop.permute.xlu0 %448
        %v450 = vlaneseq
        %v451 = vand.u32 %v450, 127
        %vm452 = vcmp.ge.s32.totalorder %v451, 64
        %vm453 = vcmp.lt.s32.totalorder %v451, 96
        %vm454 = vmand %vm452, %vm453
        %v455 = vsel %vm454, 1.0, 0.5
        %v456 = vsel %vm454, 0.0, 0.5
        %s457 = ssub.s32 1, %s30
        %s458 = smul.u32 %s457, 4
        %v459 = vld [vmem:[%s374] sm:$0xff]
        %v460 = vld [vmem:[%s374 + $0x8] sm:$0xff]
        %v461 = vld [vmem:[%s374 + $0x10] sm:$0xff]
        %v462 = vld [vmem:[%s374 + $0x18] sm:$0xff]
        %v464 = vlaneseq
        %v465 = vshrl.u32 %v464, 7
        %v466 = vsub.s32 0, %v465
        %v467 = vrot.slane %v445, %v466
        %vm469 = vcmask 130048
        %v471 = vsel %vm469, %v459, 0
        %v474 = vsel %vm469, %v460, 0
        %v477 = vsel %vm469, %v461, 0
        %v480 = vsel %vm469, %v462, 0
        %482 = vmatprep.subr.mxu0 0.0
        %483 = vmatpush1.msra.mxu0 %v439
        %484 = vmatprep.subr.mxu0 0.0
        %485 = vmatpush1.msra.mxu0 %v440
        %486 = vmatprep.subr.mxu0 0.0
        %487 = vmatpush1.msra.mxu0 0.0
        %488 = vmatprep.subr.mxu0 0.0
        %489 = vmatpush1.msra.mxu0 0.0
        %490 = vmatprep.subr.mxu0 0.0
        %491 = vmatpush1.msra.mxu0 0.0
        %492 = vmatprep.subr.mxu0 0.0
        %493 = vmatpush1.msra.mxu0 0.0
        %494 = vmatprep.subr.mxu0 0.0
        %495 = vmatpush1.msra.mxu0 0.0
        %496 = vmatprep.subr.mxu0 0.0
        %497 = vmatpush1.msra.mxu0 0.0
        %498 = vmatprep.subr.mxu0 0.0
        %499 = vmatpush1.msra.mxu0 0.0
        %500 = vmatprep.subr.mxu0 0.0
        %501 = vmatpush1.msra.mxu0 0.0
        %502 = vmatprep.subr.mxu0 0.0
        %503 = vmatpush1.msra.mxu0 0.0
        %504 = vmatprep.subr.mxu0 0.0
        %505 = vmatpush1.msra.mxu0 0.0
        %506 = vmatprep.subr.mxu0 0.0
        %507 = vmatpush1.msra.mxu0 0.0
        %508 = vmatprep.subr.mxu0 0.0
        %509 = vmatpush1.msra.mxu0 0.0
        %510 = vmatprep.subr.mxu0 0.0
        %511 = vmatpush1.msra.mxu0 0.0
        %512 = vmatprep.subr.mxu0 0.0
        %513 = vmatpush1.msra.mxu0 0.0
        %514 = vmatprep.subr.mxu0 0.0
        %515 = vmatpush1.msra.mxu0 0.0
        %516 = vmatprep.subr.mxu0 0.0
        %517 = vmatpush1.msra.mxu0 0.0
        %518 = vmatprep.subr.mxu0 0.0
        %519 = vmatpush1.msra.mxu0 0.0
        %520 = vmatprep.subr.mxu0 0.0
        %521 = vmatpush1.msra.mxu0 0.0
        %522 = vmatprep.subr.mxu0 0.0
        %523 = vmatpush1.msra.mxu0 0.0
        %524 = vmatprep.subr.mxu0 0.0
        %525 = vmatpush1.msra.mxu0 0.0
        %526 = vmatprep.subr.mxu0 0.0
        %527 = vmatpush1.msra.mxu0 0.0
        %528 = vmatprep.subr.mxu0 0.0
        %529 = vmatpush1.msra.mxu0 0.0
        %530 = vmatprep.subr.mxu0 0.0
        %531 = vmatpush1.msra.mxu0 0.0
        %532 = vmatprep.subr.mxu0 0.0
        %533 = vmatpush1.msra.mxu0 0.0
        %534 = vmatprep.subr.mxu0 0.0
        %535 = vmatpush1.msra.mxu0 0.0
        %536 = vmatprep.subr.mxu0 0.0
        %537 = vmatpush1.msra.mxu0 0.0
        %538 = vmatprep.subr.mxu0 0.0
        %539 = vmatpush1.msra.mxu0 0.0
        %540 = vmatprep.subr.mxu0 0.0
        %541 = vmatpush1.msra.mxu0 0.0
        %542 = vmatprep.subr.mxu0 0.0
        %543 = vmatpush1.msra.mxu0 0.0
        %544 = vmatprep.subr.mxu0 0.0
        %545 = vmatpush1.msra.mxu0 0.0
        %546 = vmatprep.mubr.f32.mxu0 0.0
        %547 = vmatmul.mubr.f32.gmra.mrb[0].mxu0 %v471
        %v548 = vpop.f32.mrb[0].mxu0
        %v549 = vadd.f32 %v467, %v548
        %v550 = vpop.f32.mrb[0].mxu0
        %551 = vmatprep.mubr.f32.mxu0 0.0
        %552 = vmatmul.mubr.f32.gmra.mrb[0].mxu0 %v474
        %v553 = vpop.f32.mrb[0].mxu0
        %v554 = vadd.f32 %v467, %v553
        %v555 = vpop.f32.mrb[0].mxu0
        %556 = vmatprep.mubr.f32.mxu0 0.0
        %557 = vmatmul.mubr.f32.gmra.mrb[0].mxu0 %v477
        %v558 = vpop.f32.mrb[0].mxu0
        %v559 = vadd.f32 %v467, %v558
        %v560 = vpop.f32.mrb[0].mxu0
        %561 = vmatprep.mubr.f32.mxu0 0.0
        %562 = vmatmul.mubr.f32.gmra.mrb[0].mxu0 %v480
        %v563 = vpop.f32.mrb[0].mxu0
        %v564 = vadd.f32 %v467, %v563
        %v565 = vpop.f32.mrb[0].mxu0
        %566 = vdwg.mxu0
        %567 = vst [vmem:[#allocation2] sm:$0xff] %v549
        %568 = vst [vmem:[#allocation2 + $0x8] sm:$0xff] %v554
        %569 = vst [vmem:[#allocation2 + $0x10] sm:$0xff] %v559
        %570 = vst [vmem:[#allocation2 + $0x18] sm:$0xff] %v564
        %v571 = vld [vmem:[#allocation3] sm:$0xff]
        %v572 = vld [vmem:[#allocation4] sm:$0xff]
        %s573 = scalar_lea.vmem [#allocation2], 24
        %v574 = vld [vmem:[%s573] sm:$0xff]
        %vm575 = vcmask 261120
        %v577 = vsel %vm575, %v571, 0
        %579 = vmatprep.subr.mxu0 0.0
        %580 = vmatpush1.msra.mxu0 %v441
        %581 = vmatprep.subr.mxu0 0.0
        %582 = vmatpush1.msra.mxu0 %v442
        %583 = vmatprep.subr.mxu0 0.0
        %584 = vmatpush1.msra.mxu0 %v443
        %585 = vmatprep.subr.mxu0 0.0
        %586 = vmatpush1.msra.mxu0 %v444
        %587 = vmatprep.subr.mxu0 0.0
        %588 = vmatpush1.msra.mxu0 0.0
        %589 = vmatprep.subr.mxu0 0.0
        %590 = vmatpush1.msra.mxu0 0.0
        %591 = vmatprep.subr.mxu0 0.0
        %592 = vmatpush1.msra.mxu0 0.0
        %593 = vmatprep.subr.mxu0 0.0
        %594 = vmatpush1.msra.mxu0 0.0
        %595 = vmatprep.subr.mxu0 0.0
        %596 = vmatpush1.msra.mxu0 0.0
        %597 = vmatprep.subr.mxu0 0.0
        %598 = vmatpush1.msra.mxu0 0.0
        %599 = vmatprep.subr.mxu0 0.0
        %600 = vmatpush1.msra.mxu0 0.0
        %601 = vmatprep.subr.mxu0 0.0
        %602 = vmatpush1.msra.mxu0 0.0
        %603 = vmatprep.subr.mxu0 0.0
        %604 = vmatpush1.msra.mxu0 0.0
        %605 = vmatprep.subr.mxu0 0.0
        %606 = vmatpush1.msra.mxu0 0.0
        %607 = vmatprep.subr.mxu0 0.0
        %608 = vmatpush1.msra.mxu0 0.0
        %609 = vmatprep.subr.mxu0 0.0
        %610 = vmatpush1.msra.mxu0 0.0
        %611 = vmatprep.subr.mxu0 0.0
        %612 = vmatpush1.msra.mxu0 0.0
        %613 = vmatprep.subr.mxu0 0.0
        %614 = vmatpush1.msra.mxu0 0.0
        %615 = vmatprep.subr.mxu0 0.0
        %616 = vmatpush1.msra.mxu0 0.0
        %617 = vmatprep.subr.mxu0 0.0
        %618 = vmatpush1.msra.mxu0 0.0
        %619 = vmatprep.subr.mxu0 0.0
        %620 = vmatpush1.msra.mxu0 0.0
        %621 = vmatprep.subr.mxu0 0.0
        %622 = vmatpush1.msra.mxu0 0.0
        %623 = vmatprep.subr.mxu0 0.0
        %624 = vmatpush1.msra.mxu0 0.0
        %625 = vmatprep.subr.mxu0 0.0
        %626 = vmatpush1.msra.mxu0 0.0
        %627 = vmatprep.subr.mxu0 0.0
        %628 = vmatpush1.msra.mxu0 0.0
        %629 = vmatprep.subr.mxu0 0.0
        %630 = vmatpush1.msra.mxu0 0.0
        %631 = vmatprep.subr.mxu0 0.0
        %632 = vmatpush1.msra.mxu0 0.0
        %633 = vmatprep.subr.mxu0 0.0
        %634 = vmatpush1.msra.mxu0 0.0
        %635 = vmatprep.subr.mxu0 0.0
        %636 = vmatpush1.msra.mxu0 0.0
        %637 = vmatprep.subr.mxu0 0.0
        %638 = vmatpush1.msra.mxu0 0.0
        %639 = vmatprep.subr.mxu0 0.0
        %640 = vmatpush1.msra.mxu0 0.0
        %641 = vmatprep.subr.mxu0 0.0
        %642 = vmatpush1.msra.mxu0 0.0
        %643 = vmatprep.mubr.f32.mxu0 0.0
        %644 = vmatmul.mubr.f32.gmra.mrb[0].mxu0 %v577
        %v645 = vpop.f32.mrb[0].mxu0
        %v646 = vadd.f32 0.0, %v645
        %v647 = vpop.f32.mrb[0].mxu0
        %648 = vdwg.mxu0
        %v649 = vadd.f32 %v574, %v646
        %v650 = vmul.f32 %v649, %v455
        %v651 = vtanh.pop %v650
        %v652 = vmul.f32 %v651, %v455
        %v653 = vadd.f32 %v652, %v456
        %655 = vrot.lane.b32.xlu0 %v572, 32
        %v656 = vpop.permute.xlu0 %655
        %v658 = vmul.f32 %v653, %v656
        %660 = vrot.lane.b32.xlu0 %v653, 64
        %v661 = vpop.permute.xlu0 %660
        %v663 = vmul.f32 %v653, %v661
        %665 = vrot.lane.b32.xlu0 %v663, 32
        %v666 = vpop.permute.xlu0 %665
        %v668 = vadd.f32 %v658, %v666
        %v669 = vtanh.pop %v668
        %671 = vrot.lane.b32.xlu0 %v669, 64
        %v672 = vpop.permute.xlu0 %671
        %v674 = vmul.f32 %v653, %v672
        %s675 = sadd.s32 %s458, 3
        %v676 = vstv %s675
        %vm677 = vcmp.lt.s32.totalorder %v676, %v449
        %678 = vrot.lane.b32.xlu0 %v571, 96
        %v679 = vpop.permute.xlu0 %678
        %v681 = vsel %vm677, %v674, %v679
        %v682 = vsel %vm677, %v668, %v656
        %s683 = scalar_lea.vmem [#allocation2], 16
        %v684 = vld [vmem:[%s683] sm:$0xff]
        %686 = vrot.lane.b32.xlu0 %v681, 32
        %v687 = vpop.permute.xlu0 %686
        %v688 = vsel %vm575, %v687, 0
        %690 = vmatprep.subr.mxu0 0.0
        %691 = vmatpush1.msra.mxu0 %v441
        %692 = vmatprep.subr.mxu0 0.0
        %693 = vmatpush1.msra.mxu0 %v442
        %694 = vmatprep.subr.mxu0 0.0
        %695 = vmatpush1.msra.mxu0 %v443
        %696 = vmatprep.subr.mxu0 0.0
        %697 = vmatpush1.msra.mxu0 %v444
        %698 = vmatprep.subr.mxu0 0.0
        %699 = vmatpush1.msra.mxu0 0.0
        %700 = vmatprep.subr.mxu0 0.0
        %701 = vmatpush1.msra.mxu0 0.0
        %702 = vmatprep.subr.mxu0 0.0
        %703 = vmatpush1.msra.mxu0 0.0
        %704 = vmatprep.subr.mxu0 0.0
        %705 = vmatpush1.msra.mxu0 0.0
        %706 = vmatprep.subr.mxu0 0.0
        %707 = vmatpush1.msra.mxu0 0.0
        %708 = vmatprep.subr.mxu0 0.0
        %709 = vmatpush1.msra.mxu0 0.0
        %710 = vmatprep.subr.mxu0 0.0
        %711 = vmatpush1.msra.mxu0 0.0
        %712 = vmatprep.subr.mxu0 0.0
        %713 = vmatpush1.msra.mxu0 0.0
        %714 = vmatprep.subr.mxu0 0.0
        %715 = vmatpush1.msra.mxu0 0.0
        %716 = vmatprep.subr.mxu0 0.0
        %717 = vmatpush1.msra.mxu0 0.0
        %718 = vmatprep.subr.mxu0 0.0
        %719 = vmatpush1.msra.mxu0 0.0
        %720 = vmatprep.subr.mxu0 0.0
        %721 = vmatpush1.msra.mxu0 0.0
        %722 = vmatprep.subr.mxu0 0.0
        %723 = vmatpush1.msra.mxu0 0.0
        %724 = vmatprep.subr.mxu0 0.0
        %725 = vmatpush1.msra.mxu0 0.0
        %726 = vmatprep.subr.mxu0 0.0
        %727 = vmatpush1.msra.mxu0 0.0
        %728 = vmatprep.subr.mxu0 0.0
        %729 = vmatpush1.msra.mxu0 0.0
        %730 = vmatprep.subr.mxu0 0.0
        %731 = vmatpush1.msra.mxu0 0.0
        %732 = vmatprep.subr.mxu0 0.0
        %733 = vmatpush1.msra.mxu0 0.0
        %734 = vmatprep.subr.mxu0 0.0
        %735 = vmatpush1.msra.mxu0 0.0
        %736 = vmatprep.subr.mxu0 0.0
        %737 = vmatpush1.msra.mxu0 0.0
        %738 = vmatprep.subr.mxu0 0.0
        %739 = vmatpush1.msra.mxu0 0.0
        %740 = vmatprep.subr.mxu0 0.0
        %741 = vmatpush1.msra.mxu0 0.0
        %742 = vmatprep.subr.mxu0 0.0
        %743 = vmatpush1.msra.mxu0 0.0
        %744 = vmatprep.subr.mxu0 0.0
        %745 = vmatpush1.msra.mxu0 0.0
        %746 = vmatprep.subr.mxu0 0.0
        %747 = vmatpush1.msra.mxu0 0.0
        %748 = vmatprep.subr.mxu0 0.0
        %749 = vmatpush1.msra.mxu0 0.0
        %750 = vmatprep.subr.mxu0 0.0
        %751 = vmatpush1.msra.mxu0 0.0
        %752 = vmatprep.subr.mxu0 0.0
        %753 = vmatpush1.msra.mxu0 0.0
        %754 = vmatprep.mubr.f32.mxu0 0.0
        %755 = vmatmul.mubr.f32.gmra.mrb[0].mxu0 %v688
        %v756 = vpop.f32.mrb[0].mxu0
        %v757 = vadd.f32 0.0, %v756
        %v758 = vpop.f32.mrb[0].mxu0
        %759 = vdwg.mxu0
        %v760 = vadd.f32 %v684, %v757
        %v761 = vmul.f32 %v760, %v455
        %v762 = vtanh.pop %v761
        %v763 = vmul.f32 %v762, %v455
        %v764 = vadd.f32 %v763, %v456
        %v765 = vmul.f32 %v764, %v682
        %767 = vrot.lane.b32.xlu0 %v764, 64
        %v768 = vpop.permute.xlu0 %767
        %v770 = vmul.f32 %v764, %v768
        %772 = vrot.lane.b32.xlu0 %v770, 32
        %v773 = vpop.permute.xlu0 %772
        %v775 = vadd.f32 %v765, %v773
        %v776 = vtanh.pop %v775
        %778 = vrot.lane.b32.xlu0 %v776, 64
        %v779 = vpop.permute.xlu0 %778
        %v781 = vmul.f32 %v764, %v779
        %s782 = sadd.s32 %s458, 2
        %v783 = vstv %s782
        %vm784 = vcmp.lt.s32.totalorder %v783, %v449
        %v785 = vsel %vm784, %v781, %v681
        %v786 = vsel %vm784, %v775, %v682
        %s787 = scalar_lea.vmem [#allocation2], 8
        %v788 = vld [vmem:[%s787] sm:$0xff]
        %790 = vrot.lane.b32.xlu0 %v785, 32
        %v791 = vpop.permute.xlu0 %790
        %v792 = vsel %vm575, %v791, 0
        %794 = vmatprep.subr.mxu0 0.0
        %795 = vmatpush1.msra.mxu0 %v441
        %796 = vmatprep.subr.mxu0 0.0
        %797 = vmatpush1.msra.mxu0 %v442
        %798 = vmatprep.subr.mxu0 0.0
        %799 = vmatpush1.msra.mxu0 %v443
        %800 = vmatprep.subr.mxu0 0.0
        %801 = vmatpush1.msra.mxu0 %v444
        %802 = vmatprep.subr.mxu0 0.0
        %803 = vmatpush1.msra.mxu0 0.0
        %804 = vmatprep.subr.mxu0 0.0
        %805 = vmatpush1.msra.mxu0 0.0
        %806 = vmatprep.subr.mxu0 0.0
        %807 = vmatpush1.msra.mxu0 0.0
        %808 = vmatprep.subr.mxu0 0.0
        %809 = vmatpush1.msra.mxu0 0.0
        %810 = vmatprep.subr.mxu0 0.0
        %811 = vmatpush1.msra.mxu0 0.0
        %812 = vmatprep.subr.mxu0 0.0
        %813 = vmatpush1.msra.mxu0 0.0
        %814 = vmatprep.subr.mxu0 0.0
        %815 = vmatpush1.msra.mxu0 0.0
        %816 = vmatprep.subr.mxu0 0.0
        %817 = vmatpush1.msra.mxu0 0.0
        %818 = vmatprep.subr.mxu0 0.0
        %819 = vmatpush1.msra.mxu0 0.0
        %820 = vmatprep.subr.mxu0 0.0
        %821 = vmatpush1.msra.mxu0 0.0
        %822 = vmatprep.subr.mxu0 0.0
        %823 = vmatpush1.msra.mxu0 0.0
        %824 = vmatprep.subr.mxu0 0.0
        %825 = vmatpush1.msra.mxu0 0.0
        %826 = vmatprep.subr.mxu0 0.0
        %827 = vmatpush1.msra.mxu0 0.0
        %828 = vmatprep.subr.mxu0 0.0
        %829 = vmatpush1.msra.mxu0 0.0
        %830 = vmatprep.subr.mxu0 0.0
        %831 = vmatpush1.msra.mxu0 0.0
        %832 = vmatprep.subr.mxu0 0.0
        %833 = vmatpush1.msra.mxu0 0.0
        %834 = vmatprep.subr.mxu0 0.0
        %835 = vmatpush1.msra.mxu0 0.0
        %836 = vmatprep.subr.mxu0 0.0
        %837 = vmatpush1.msra.mxu0 0.0
        %838 = vmatprep.subr.mxu0 0.0
        %839 = vmatpush1.msra.mxu0 0.0
        %840 = vmatprep.subr.mxu0 0.0
        %841 = vmatpush1.msra.mxu0 0.0
        %842 = vmatprep.subr.mxu0 0.0
        %843 = vmatpush1.msra.mxu0 0.0
        %844 = vmatprep.subr.mxu0 0.0
        %845 = vmatpush1.msra.mxu0 0.0
        %846 = vmatprep.subr.mxu0 0.0
        %847 = vmatpush1.msra.mxu0 0.0
        %848 = vmatprep.subr.mxu0 0.0
        %849 = vmatpush1.msra.mxu0 0.0
        %850 = vmatprep.subr.mxu0 0.0
        %851 = vmatpush1.msra.mxu0 0.0
        %852 = vmatprep.subr.mxu0 0.0
        %853 = vmatpush1.msra.mxu0 0.0
        %854 = vmatprep.subr.mxu0 0.0
        %855 = vmatpush1.msra.mxu0 0.0
        %856 = vmatprep.subr.mxu0 0.0
        %857 = vmatpush1.msra.mxu0 0.0
        %858 = vmatprep.mubr.f32.mxu0 0.0
        %859 = vmatmul.mubr.f32.gmra.mrb[0].mxu0 %v792
        %v860 = vpop.f32.mrb[0].mxu0
        %v861 = vadd.f32 0.0, %v860
        %v862 = vpop.f32.mrb[0].mxu0
        %863 = vdwg.mxu0
        %v864 = vadd.f32 %v788, %v861
        %v865 = vmul.f32 %v864, %v455
        %v866 = vtanh.pop %v865
        %v867 = vmul.f32 %v866, %v455
        %v868 = vadd.f32 %v867, %v456
        %v869 = vmul.f32 %v868, %v786
        %871 = vrot.lane.b32.xlu0 %v868, 64
        %v872 = vpop.permute.xlu0 %871
        %v874 = vmul.f32 %v868, %v872
        %876 = vrot.lane.b32.xlu0 %v874, 32
        %v877 = vpop.permute.xlu0 %876
        %v879 = vadd.f32 %v869, %v877
        %v880 = vtanh.pop %v879
        %882 = vrot.lane.b32.xlu0 %v880, 64
        %v883 = vpop.permute.xlu0 %882
        %v885 = vmul.f32 %v868, %v883
        %s886 = sadd.s32 %s458, 1
        %v887 = vstv %s886
        %vm888 = vcmp.lt.s32.totalorder %v887, %v449
        %v889 = vsel %vm888, %v885, %v785
        %v890 = vsel %vm888, %v879, %v786
        %v891 = vld [vmem:[#allocation2] sm:$0xff]
        %893 = vrot.lane.b32.xlu0 %v889, 32
        %v894 = vpop.permute.xlu0 %893
        %v895 = vsel %vm575, %v894, 0
        %897 = vmatprep.subr.mxu0 0.0
        %898 = vmatpush1.msra.mxu0 %v441
        %899 = vmatprep.subr.mxu0 0.0
        %900 = vmatpush1.msra.mxu0 %v442
        %901 = vmatprep.subr.mxu0 0.0
        %902 = vmatpush1.msra.mxu0 %v443
        %903 = vmatprep.subr.mxu0 0.0
        %904 = vmatpush1.msra.mxu0 %v444
        %905 = vmatprep.subr.mxu0 0.0
        %906 = vmatpush1.msra.mxu0 0.0
        %907 = vmatprep.subr.mxu0 0.0
        %908 = vmatpush1.msra.mxu0 0.0
        %909 = vmatprep.subr.mxu0 0.0
        %910 = vmatpush1.msra.mxu0 0.0
        %911 = vmatprep.subr.mxu0 0.0
        %912 = vmatpush1.msra.mxu0 0.0
        %913 = vmatprep.subr.mxu0 0.0
        %914 = vmatpush1.msra.mxu0 0.0
        %915 = vmatprep.subr.mxu0 0.0
        %916 = vmatpush1.msra.mxu0 0.0
        %917 = vmatprep.subr.mxu0 0.0
        %918 = vmatpush1.msra.mxu0 0.0
        %919 = vmatprep.subr.mxu0 0.0
        %920 = vmatpush1.msra.mxu0 0.0
        %921 = vmatprep.subr.mxu0 0.0
        %922 = vmatpush1.msra.mxu0 0.0
        %923 = vmatprep.subr.mxu0 0.0
        %924 = vmatpush1.msra.mxu0 0.0
        %925 = vmatprep.subr.mxu0 0.0
        %926 = vmatpush1.msra.mxu0 0.0
        %927 = vmatprep.subr.mxu0 0.0
        %928 = vmatpush1.msra.mxu0 0.0
        %929 = vmatprep.subr.mxu0 0.0
        %930 = vmatpush1.msra.mxu0 0.0
        %931 = vmatprep.subr.mxu0 0.0
        %932 = vmatpush1.msra.mxu0 0.0
        %933 = vmatprep.subr.mxu0 0.0
        %934 = vmatpush1.msra.mxu0 0.0
        %935 = vmatprep.subr.mxu0 0.0
        %936 = vmatpush1.msra.mxu0 0.0
        %937 = vmatprep.subr.mxu0 0.0
        %938 = vmatpush1.msra.mxu0 0.0
        %939 = vmatprep.subr.mxu0 0.0
        %940 = vmatpush1.msra.mxu0 0.0
        %941 = vmatprep.subr.mxu0 0.0
        %942 = vmatpush1.msra.mxu0 0.0
        %943 = vmatprep.subr.mxu0 0.0
        %944 = vmatpush1.msra.mxu0 0.0
        %945 = vmatprep.subr.mxu0 0.0
        %946 = vmatpush1.msra.mxu0 0.0
        %947 = vmatprep.subr.mxu0 0.0
        %948 = vmatpush1.msra.mxu0 0.0
        %949 = vmatprep.subr.mxu0 0.0
        %950 = vmatpush1.msra.mxu0 0.0
        %951 = vmatprep.subr.mxu0 0.0
        %952 = vmatpush1.msra.mxu0 0.0
        %953 = vmatprep.subr.mxu0 0.0
        %954 = vmatpush1.msra.mxu0 0.0
        %955 = vmatprep.subr.mxu0 0.0
        %956 = vmatpush1.msra.mxu0 0.0
        %957 = vmatprep.subr.mxu0 0.0
        %958 = vmatpush1.msra.mxu0 0.0
        %959 = vmatprep.subr.mxu0 0.0
        %960 = vmatpush1.msra.mxu0 0.0
        %961 = vmatprep.mubr.f32.mxu0 0.0
        %962 = vmatmul.mubr.f32.gmra.mrb[0].mxu0 %v895
        %v963 = vpop.f32.mrb[0].mxu0
        %v964 = vadd.f32 0.0, %v963
        %v965 = vpop.f32.mrb[0].mxu0
        %966 = vdwg.mxu0
        %v967 = vadd.f32 %v891, %v964
        %v968 = vmul.f32 %v967, %v455
        %v969 = vtanh.pop %v968
        %v970 = vmul.f32 %v969, %v455
        %v971 = vadd.f32 %v970, %v456
        %v972 = vmul.f32 %v971, %v890
        %974 = vrot.lane.b32.xlu0 %v971, 64
        %v975 = vpop.permute.xlu0 %974
        %v977 = vmul.f32 %v971, %v975
        %979 = vrot.lane.b32.xlu0 %v977, 32
        %v980 = vpop.permute.xlu0 %979
        %v982 = vadd.f32 %v972, %v980
        %v983 = vtanh.pop %v982
        %985 = vrot.lane.b32.xlu0 %v983, 64
        %v986 = vpop.permute.xlu0 %985
        %v988 = vmul.f32 %v971, %v986
        %v989 = vstv %s458
        %vm990 = vcmp.lt.s32.totalorder %v989, %v449
        %v991 = vsel %vm990, %v988, %v889
        %v992 = vsel %vm990, %v982, %v890
        %994 = vrot.lane.b32.xlu0 %v991, 32
        %v995 = vpop.permute.xlu0 %994
        %997 = vst.msk [vmem:[#allocation3] sm:$0xff] %vm575, %v995
        %999 = vrot.lane.b32.xlu0 %v992, 96
        %v1000 = vpop.permute.xlu0 %999
        %1002 = vst.msk [vmem:[#allocation4] sm:$0xff] %vm575, %v1000
        %p1003 = scmp.eq.s32.totalorder %s30, 1
        // Predicated region
        $region73: #{tpu_custom_call.1} parent=55 // pred_check
          %p1004 = pneg %p1003
        $region74: #{tpu_custom_call.1} parent=55 // pred_check_branch
          %1006 = sbr.rel (%p1004) target = $region76
        $region75: #{tpu_custom_call.1} parent=55 // pred_region
          %v1007 = vld [vmem:[%s7] sm:$0xff]
          %v1008 = vld [vmem:[%s7 + $0x8] sm:$0xff]
          %v1009 = vld [vmem:[%s7 + $0x10] sm:$0xff]
          %v1010 = vld [vmem:[%s7 + $0x18] sm:$0xff]
          %v1011 = vld [vmem:[%s8] sm:$0x1]
          %v1013 = vlaneseq
          %v1014 = vshrl.u32 %v1013, 7
          %v1015 = vsub.s32 0, %v1014
          %v1016 = vrot.slane %v1011, %v1015
          %v1018 = vsel %vm575, %v995, 0
          %1020 = vmatprep.subr.mxu0 0.0
          %1021 = vmatpush1.msra.mxu0 %v1007
          %1022 = vmatprep.subr.mxu0 0.0
          %1023 = vmatpush1.msra.mxu0 %v1008
          %1024 = vmatprep.subr.mxu0 0.0
          %1025 = vmatpush1.msra.mxu0 %v1009
          %1026 = vmatprep.subr.mxu0 0.0
          %1027 = vmatpush1.msra.mxu0 %v1010
          %1028 = vmatprep.subr.mxu0 0.0
          %1029 = vmatpush1.msra.mxu0 0.0
          %1030 = vmatprep.subr.mxu0 0.0
          %1031 = vmatpush1.msra.mxu0 0.0
          %1032 = vmatprep.subr.mxu0 0.0
          %1033 = vmatpush1.msra.mxu0 0.0
          %1034 = vmatprep.subr.mxu0 0.0
          %1035 = vmatpush1.msra.mxu0 0.0
          %1036 = vmatprep.subr.mxu0 0.0
          %1037 = vmatpush1.msra.mxu0 0.0
          %1038 = vmatprep.subr.mxu0 0.0
          %1039 = vmatpush1.msra.mxu0 0.0
          %1040 = vmatprep.subr.mxu0 0.0
          %1041 = vmatpush1.msra.mxu0 0.0
          %1042 = vmatprep.subr.mxu0 0.0
          %1043 = vmatpush1.msra.mxu0 0.0
          %1044 = vmatprep.subr.mxu0 0.0
          %1045 = vmatpush1.msra.mxu0 0.0
          %1046 = vmatprep.subr.mxu0 0.0
          %1047 = vmatpush1.msra.mxu0 0.0
          %1048 = vmatprep.subr.mxu0 0.0
          %1049 = vmatpush1.msra.mxu0 0.0
          %1050 = vmatprep.subr.mxu0 0.0
          %1051 = vmatpush1.msra.mxu0 0.0
          %1052 = vmatprep.subr.mxu0 0.0
          %1053 = vmatpush1.msra.mxu0 0.0
          %1054 = vmatprep.subr.mxu0 0.0
          %1055 = vmatpush1.msra.mxu0 0.0
          %1056 = vmatprep.subr.mxu0 0.0
          %1057 = vmatpush1.msra.mxu0 0.0
          %1058 = vmatprep.subr.mxu0 0.0
          %1059 = vmatpush1.msra.mxu0 0.0
          %1060 = vmatprep.subr.mxu0 0.0
          %1061 = vmatpush1.msra.mxu0 0.0
          %1062 = vmatprep.subr.mxu0 0.0
          %1063 = vmatpush1.msra.mxu0 0.0
          %1064 = vmatprep.subr.mxu0 0.0
          %1065 = vmatpush1.msra.mxu0 0.0
          %1066 = vmatprep.subr.mxu0 0.0
          %1067 = vmatpush1.msra.mxu0 0.0
          %1068 = vmatprep.subr.mxu0 0.0
          %1069 = vmatpush1.msra.mxu0 0.0
          %1070 = vmatprep.subr.mxu0 0.0
          %1071 = vmatpush1.msra.mxu0 0.0
          %1072 = vmatprep.subr.mxu0 0.0
          %1073 = vmatpush1.msra.mxu0 0.0
          %1074 = vmatprep.subr.mxu0 0.0
          %1075 = vmatpush1.msra.mxu0 0.0
          %1076 = vmatprep.subr.mxu0 0.0
          %1077 = vmatpush1.msra.mxu0 0.0
          %1078 = vmatprep.subr.mxu0 0.0
          %1079 = vmatpush1.msra.mxu0 0.0
          %1080 = vmatprep.subr.mxu0 0.0
          %1081 = vmatpush1.msra.mxu0 0.0
          %1082 = vmatprep.subr.mxu0 0.0
          %1083 = vmatpush1.msra.mxu0 0.0
          %1084 = vmatprep.mubr.f32.mxu0 0.0
          %1085 = vmatmul.mubr.f32.gmra.mrb[0].mxu0 %v1018
          %v1086 = vpop.f32.mrb[0].mxu0
          %v1087 = vadd.f32 %v1016, %v1086
          %v1088 = vpop.f32.mrb[0].mxu0
          %1089 = vdwg.mxu0
          %vm1090 = vcmask 39936
          %v1091 = vsel %vm1090, %v1087, -inf
          %1092 = vmax.xlane.f32.xlu0 %v1091
          %v1093 = vpop.xlane.xlu0 %1092
          %v1094 = vsub.f32 %v1087, %v1093
          %v1095 = vmul.f32 %v1094, 1.442695
          %v1096 = vpow.pop %v1095
          %v1097 = vsel %vm1090, %v1096, 0.0
          %1098 = vadd.xlane.f32.xlu0 %v1097
          %v1099 = vpop.xlane.xlu0 %1098
          %v1100 = vlog2.pop %v1099
          %v1101 = vmul.f32 %v1100, 0.6931472
          %v1102 = vsub.f32 %v1094, %v1101
          %1103 = vst.msk [vmem:[#allocation11] sm:$0xff] %vm1090, %v1102
        $region76: #{tpu_custom_call.1} parent=55 // pred_fallthru
          _
        // Predicated region
        $region77: #{tpu_custom_call.1} parent=55 // pred_check
          %p1104 = pneg %p268
        $region78: #{tpu_custom_call.1} parent=55 // pred_check_branch
          %1106 = sbr.rel (%p1104) target = $region80
        $region79: #{tpu_custom_call.1} parent=55 // pred_region
          %s1108 = ssub.s32 128, 128
          %1109 = vsyncadd [#allocation7], %s1108
          %s1110 = smul.addr %s29, 128
          %s1111 = scalar_lea.hbm %s9, %s1110
          %s1113 = sshll.u32 [#allocation11], 4
          %s1114 = int_to_ptr.vmem [resolvable:$true] %s1113
          %1116 = dma.vmem_to_hbm [thread:$0]  %s1114, 128, %s1111, [#allocation7]
        $region80: #{tpu_custom_call.1} parent=55 // pred_fallthru
          _
        // Predicated region
        $region81: #{tpu_custom_call.1} parent=55 // pred_check
          %p1117 = pneg %p268
        $region82: #{tpu_custom_call.1} parent=55 // pred_check_branch
          %1119 = sbr.rel (%p1117) target = $region84
        $region83: #{tpu_custom_call.1} parent=55 // pred_region
          %1120 = dma.done [#allocation7], 128
        $region84: #{tpu_custom_call.1} parent=55 // pred_fallthru
          _
      $region56: #{tpu_custom_call.1} parent=5 // pred_fallthru
        _
      %p1121 = scmp.le.s32.totalorder 2, %s20
      // Predicated region
      $region85: #{tpu_custom_call.1} parent=5 // pred_check
        %p1122 = pneg %p1121
      $region86: #{tpu_custom_call.1} parent=5 // pred_check_branch
        %1124 = sbr.rel (%p1122) target = $region88
      $region87: #{tpu_custom_call.1} parent=5 // pred_region
        %s1125 = ssub.s32 %s20, 2
      $region88: #{tpu_custom_call.1} parent=5 // pred_fallthru
        _
    $region6: #{tpu_custom_call.1} parent=1 // loop_footer
      %s24 = sadd.s32 1, %s20
    $region7: #{tpu_custom_call.1} parent=1 // loop_footer_branch
      %19 = sbr.rel target = $region3
    $region8: #{tpu_custom_call.1} parent=1 // loop_exit
      _
    %1126 = vsyncpa [#allocation6], 1
    %s1127 = scalar_lea.sflag [#allocation6], 1
    %1128 = vsyncpa %s1127, 1
    %1129 = vsyncpa [#allocation9], 1
    %1130 = vsyncpa [#allocation7], 1
    %s1131 = scalar_lea.sflag [#allocation7], 1
    %1132 = vsyncpa %s1131, 1

</llo_original>
